<compile_context>
chip_gen: v5e
topology: v5e:2x2
jax: 0.10.0
libtpu: 0.0.40
codegen_flags: <defaults>
</compile_context>

<pallas_src>
import math

import numpy as np
import jax
import jax.numpy as jnp
from jax import lax
from jax.experimental import pallas as pl
from jax.experimental.pallas import tpu as pltpu


_SENTINEL = -(2 ** 31)   # label value marking padded / filtered-out rows
_NEG = -1.0e30           # finite "-inf" for the online max (avoids inf-inf -> NaN)


def _lac_kernel(inv_t_ref, a_row_ref, a_col_ref, lab_a_ref, lab_c_ref,
                o_ref, m_ref, l_ref, s1_ref, s2_ref, a_scaled_ref):
    """One (row-tile i, col-tile k) step of the fused LAC loss.

    Row-resident scratch (persists across k, re-initialized at k == 0):
      m_ref, l_ref : online logsumexp state over masked logits        [TM, 1] f32
      s1_ref       : sum_j pos_mask * logits                          [TM, 1] f32
      s2_ref       : sum_j pos_mask (positive count)                  [TM, 1] f32
      a_scaled_ref : row tile of A pre-scaled by 1/temperature        [TM, D] bf16
    """
    i = pl.program_id(0)
    k = pl.program_id(1)
    nk = pl.num_programs(1)

    tm = a_row_ref.shape[0]
    tk = a_col_ref.shape[0]

    @pl.when(k == 0)
    def _init():
        inv_t = inv_t_ref[0]
        # Fold 1/temperature into the LHS once per row tile.
        a_scaled_ref[...] = (a_row_ref[...].astype(jnp.float32) * inv_t
                             ).astype(jnp.bfloat16)
        m_ref[...] = jnp.full_like(m_ref, _NEG)
        l_ref[...] = jnp.zeros_like(l_ref)
        s1_ref[...] = jnp.zeros_like(s1_ref)
        s2_ref[...] = jnp.zeros_like(s2_ref)

    # logits tile = (A_i / T) @ A_k^T  == anchor_dot_contrast tile  (MXU, bf16 -> f32)
    s = lax.dot_general(
        a_scaled_ref[...], a_col_ref[...],
        dimension_numbers=(((1,), (1,)), ((), ())),
        preferred_element_type=jnp.float32,
    )                                                               # [TM, TK]

    row_g = i * tm + lax.broadcasted_iota(jnp.int32, (tm, tk), 0)
    col_g = k * tk + lax.broadcasted_iota(jnp.int32, (tm, tk), 1)
    lab_a = lab_a_ref[...]                                          # [TM, 1] int32
    lab_c = lab_c_ref[...]                                          # [1, TK] int32

    col_valid = lab_c != _SENTINEL                                  # [1, TK]
    lse_mask = (row_g != col_g) & col_valid                         # [TM, TK]
    pos_mask = lse_mask & (lab_a == lab_c)                          # [TM, TK]

    # ---- online logsumexp over masked logits (softmax denominator) ----
    s_for_max = jnp.where(lse_mask, s, _NEG)
    tile_max = jnp.max(s_for_max, axis=1, keepdims=True)            # [TM, 1]
    m_old = m_ref[...]
    m_new = jnp.maximum(m_old, tile_max)
    p = jnp.where(lse_mask, jnp.exp(s - m_new), 0.0)
    alpha = jnp.exp(m_old - m_new)
    l_ref[...] = alpha * l_ref[...] + jnp.sum(p, axis=1, keepdims=True)
    m_ref[...] = m_new

    # ---- positive-pair numerator and count ----
    s1_ref[...] = s1_ref[...] + jnp.sum(jnp.where(pos_mask, s, 0.0),
                                        axis=1, keepdims=True)
    s2_ref[...] = s2_ref[...] + jnp.sum(pos_mask.astype(jnp.float32),
                                        axis=1, keepdims=True)

    @pl.when(k == nk - 1)
    def _finalize():
        row_valid = lab_a != _SENTINEL                              # [TM, 1]
        lse = m_ref[...] + jnp.log(l_ref[...])
        s2 = s2_ref[...]
        # mean_log_prob_pos_i = (sum_j pos*logits - count_i * logsumexp_i) / count_i
        mlpp = (s1_ref[...] - s2 * lse) / s2
        o_ref[...] = jnp.where(row_valid, mlpp, 0.0)


def lac_loss(features, labels, temperature, *, block_m=128, block_k=128):
    """Forward pass of LACLoss.

    features: [bsz, n_views, dim] float; labels: [bsz] int (zero labels dropped).
    block_m / block_k: per-chip tunables (128 for v5e; 256/512 fit v6e/v7x VMEM).
    """
    features = jnp.asarray(features, jnp.float32)
    labels = jnp.asarray(labels, jnp.int32)
    bsz, n_views, dim = features.shape

    # ---- static-shape equivalent of torch's dynamic filtering ----
    # torch: labels = labels[labels != 0]; features = features[:len(labels)]
    # -> the j-th nonzero label is paired with feature row j; sample j is valid
    #    iff j < #nonzero.  Done with unique-key argsort + validity mask.
    nonzero = labels != 0
    n_keep = jnp.sum(nonzero.astype(jnp.int32))                     # traced scalar
    order = jnp.argsort(jnp.where(nonzero, 0, bsz) + jnp.arange(bsz))
    compact_labels = labels[order]                                  # nonzeros first
    sample_valid = jnp.arange(bsz) < n_keep                         # [bsz]

    lab = jnp.where(sample_valid, compact_labels, _SENTINEL)        # [bsz]
    feats = jnp.where(sample_valid[:, None, None], features, 0.0)   # [bsz, V, D]

    # contrast_feature = cat(unbind(features, 1), 0)  -> view-major [N, D]
    n = bsz * n_views
    a = jnp.transpose(feats, (1, 0, 2)).reshape(n, dim)
    lab_n = jnp.tile(lab, (n_views,))                               # [N]

    # ---- pad to MXU / lane friendly shapes ----
    blk = math.lcm(block_m, block_k)
    n_pad = ((n + blk - 1) // blk) * blk
    d_pad = ((dim + 127) // 128) * 128
    a = jnp.pad(a, ((0, n_pad - n), (0, d_pad - dim)))
    lab_n = jnp.pad(lab_n, (0, n_pad - n), constant_values=_SENTINEL)

    a_bf16 = a.astype(jnp.bfloat16)            # bf16 MXU inputs, f32 accumulation
    lab_anchor = lab_n.reshape(n_pad, 1)       # labels for row tiles   [Np, 1]
    lab_contrast = lab_n.reshape(1, n_pad)     # labels for col tiles   [1, Np]
    inv_t = (1.0 / jnp.asarray(temperature, jnp.float32)).reshape(1)

    grid = (n_pad // block_m, n_pad // block_k)
    per_row = pl.pallas_call(
        _lac_kernel,
        out_shape=jax.ShapeDtypeStruct((n_pad, 1), jnp.float32),
        grid_spec=pltpu.PrefetchScalarGridSpec(
            num_scalar_prefetch=0,
            grid=grid,
            in_specs=[
                pl.BlockSpec(memory_space=pltpu.SMEM),                 # 1/temperature
                pl.BlockSpec((block_m, d_pad), lambda i, k: (i, 0)),   # anchor rows
                pl.BlockSpec((block_k, d_pad), lambda i, k: (k, 0)),   # contrast rows
                pl.BlockSpec((block_m, 1), lambda i, k: (i, 0)),       # anchor labels
                pl.BlockSpec((1, block_k), lambda i, k: (0, k)),       # contrast labels
            ],
            out_specs=pl.BlockSpec((block_m, 1), lambda i, k: (i, 0)),
            scratch_shapes=[
                pltpu.VMEM((block_m, 1), jnp.float32),       # m  (running max)
                pltpu.VMEM((block_m, 1), jnp.float32),       # l  (running sum exp)
                pltpu.VMEM((block_m, 1), jnp.float32),       # S1
                pltpu.VMEM((block_m, 1), jnp.float32),       # S2
                pltpu.VMEM((block_m, d_pad), jnp.bfloat16),  # scaled row tile
            ],
        ),
        compiler_params=pltpu.CompilerParams(
            dimension_semantics=("parallel", "arbitrary"),
        ),
    )(inv_t, a_bf16, a_bf16, lab_anchor, lab_contrast)

    # Final mean over the valid anchors only (padded rows were zeroed in-kernel).
    n_anchor = (n_keep * n_views).astype(jnp.float32)
    return -jnp.sum(per_row) / n_anchor


def _ref_loss_numpy(features, labels, temperature):
    """float64 numpy port of the torch forward (the spec)."""
    feats = np.asarray(features, dtype=np.float64)
    lab = np.asarray(labels)
    nz = lab[lab != 0]
    bs = nz.shape[0]
    feats = feats[:bs]
    v = feats.shape[1]
    n = bs * v
    cf = np.concatenate([feats[:, i, :] for i in range(v)], axis=0)   # [N, D]
    adc = cf @ cf.T / temperature
    logits = adc - adc.max(axis=1, keepdims=True)
    mask = (nz.reshape(-1, 1) == nz.reshape(1, -1)).astype(np.float64)
    mask = np.tile(mask, (v, v))
    logits_mask = np.ones((n, n)) - np.eye(n)
    mask = mask * logits_mask
    exp_logits = np.exp(logits) * logits_mask
    log_prob = logits - np.log(exp_logits.sum(axis=1, keepdims=True))
    mean_log_prob_pos = (mask * log_prob).sum(axis=1) / mask.sum(axis=1)
    return float(np.mean(-mean_log_prob_pos))


if __name__ == "__main__":
    key = jax.random.PRNGKey(0)
    bsz, n_views, dim = 10, 2, 128
    features = jax.random.normal(key, (bsz, n_views, dim), dtype=jnp.float32)
    # L2-normalize features (standard for supervised-contrastive losses); raw
    # random-normal features make the reference softmax underflow to -inf too.
    features = features / jnp.linalg.norm(features, axis=-1, keepdims=True)

    labels_np = np.array([1, 2, 0, 3, 1, 2, 0, 4, 3, 4], dtype=np.int32)
    labels = jnp.asarray(labels_np)
    temperature = 0.1

    loss = lac_loss(features, labels, temperature)
    loss = float(jax.block_until_ready(loss))

    ref = _ref_loss_numpy(np.asarray(features), labels_np, temperature)
    assert np.isfinite(loss), f"kernel produced non-finite loss: {loss}"
    # bf16 MXU inputs with f32 accumulation -> small quantization error vs f64 ref.
    assert abs(loss - ref) <= 3e-2 * max(1.0, abs(ref)), (loss, ref)
    print("KERNEL_OK")
</pallas_src>

<mosaic_0001>
module attributes {stable_mosaic.version = 11 : i64} {
  func.func @_lac_kernel(%arg0: i32, %arg1: i32, %arg2: memref<1xf32, #tpu.memory_space<smem>>, %arg3: memref<128x128xbf16, #tpu.memory_space<vmem>>, %arg4: memref<128x128xbf16, #tpu.memory_space<vmem>>, %arg5: memref<128x1xi32, #tpu.memory_space<vmem>>, %arg6: memref<1x128xi32, #tpu.memory_space<vmem>>, %arg7: memref<128x1xf32, #tpu.memory_space<vmem>>, %arg8: memref<128x1xf32, #tpu.memory_space<vmem>>, %arg9: memref<128x1xf32, #tpu.memory_space<vmem>>, %arg10: memref<128x1xf32, #tpu.memory_space<vmem>>, %arg11: memref<128x1xf32, #tpu.memory_space<vmem>>, %arg12: memref<128x128xbf16, #tpu.memory_space<vmem>>) attributes {dimension_semantics = [#tpu.dimension_semantics<parallel>, #tpu.dimension_semantics<arbitrary>], iteration_bounds = array<i64: 1, 1>, scalar_prefetch = 0 : i64, scratch_operands = 5 : i64, tpu.core_type = #tpu.core_type<tc>, window_params = [{transform_indices = @transform_0, window_bounds = array<i64: 1>}, {transform_indices = @transform_1, window_bounds = array<i64: 128, 128>}, {transform_indices = @transform_2, window_bounds = array<i64: 128, 128>}, {transform_indices = @transform_3, window_bounds = array<i64: 128, 1>}, {transform_indices = @transform_4, window_bounds = array<i64: 1, 128>}, {transform_indices = @transform_5, window_bounds = array<i64: 128, 1>}]} {
    %c0_i32 = arith.constant 0 : i32
    %0 = arith.cmpi eq, %arg1, %c0_i32 : i32
    %1 = arith.extui %0 : i1 to i32
    %c0_i32_0 = arith.constant 0 : i32
    %2 = arith.cmpi ne, %1, %c0_i32_0 : i32
    scf.if %2 {
      %c0_34 = arith.constant 0 : index
      %62 = memref.load %arg2[%c0_34] : memref<1xf32, #tpu.memory_space<smem>>
      %c0_35 = arith.constant 0 : index
      %c0_36 = arith.constant 0 : index
      %63 = vector.load %arg3[%c0_35, %c0_36] : memref<128x128xbf16, #tpu.memory_space<vmem>>, vector<128x128xbf16>
      %64 = arith.extf %63 : vector<128x128xbf16> to vector<128x128xf32>
      %65 = vector.broadcast %62 : f32 to vector<128x128xf32>
      %66 = arith.mulf %64, %65 : vector<128x128xf32>
      %67 = arith.truncf %66 : vector<128x128xf32> to vector<128x128xbf16>
      %c0_37 = arith.constant 0 : index
      %c0_38 = arith.constant 0 : index
      %68 = vector.load %arg12[%c0_37, %c0_38] : memref<128x128xbf16, #tpu.memory_space<vmem>>, vector<128x128xbf16>
      tpu.vector_store %arg12[%c0_37, %c0_38], %67 {strides = array<i32>} : memref<128x128xbf16, #tpu.memory_space<vmem>>, vector<128x128xbf16>,
      %cst_39 = arith.constant -1.000000e+30 : f32
      %69 = vector.broadcast %cst_39 : f32 to vector<128x1xf32>
      %c0_40 = arith.constant 0 : index
      %c0_41 = arith.constant 0 : index
      %70 = vector.load %arg8[%c0_40, %c0_41] : memref<128x1xf32, #tpu.memory_space<vmem>>, vector<128x1xf32>
      tpu.vector_store %arg8[%c0_40, %c0_41], %69 {strides = array<i32>} : memref<128x1xf32, #tpu.memory_space<vmem>>, vector<128x1xf32>,
      %cst_42 = arith.constant 0.000000e+00 : f32
      %71 = vector.broadcast %cst_42 : f32 to vector<128x1xf32>
      %c0_43 = arith.constant 0 : index
      %c0_44 = arith.constant 0 : index
      %72 = vector.load %arg9[%c0_43, %c0_44] : memref<128x1xf32, #tpu.memory_space<vmem>>, vector<128x1xf32>
      tpu.vector_store %arg9[%c0_43, %c0_44], %71 {strides = array<i32>} : memref<128x1xf32, #tpu.memory_space<vmem>>, vector<128x1xf32>,
      %cst_45 = arith.constant 0.000000e+00 : f32
      %73 = vector.broadcast %cst_45 : f32 to vector<128x1xf32>
      %c0_46 = arith.constant 0 : index
      %c0_47 = arith.constant 0 : index
      %74 = vector.load %arg10[%c0_46, %c0_47] : memref<128x1xf32, #tpu.memory_space<vmem>>, vector<128x1xf32>
      tpu.vector_store %arg10[%c0_46, %c0_47], %73 {strides = array<i32>} : memref<128x1xf32, #tpu.memory_space<vmem>>, vector<128x1xf32>,
      %cst_48 = arith.constant 0.000000e+00 : f32
      %75 = vector.broadcast %cst_48 : f32 to vector<128x1xf32>
      %c0_49 = arith.constant 0 : index
      %c0_50 = arith.constant 0 : index
      %76 = vector.load %arg11[%c0_49, %c0_50] : memref<128x1xf32, #tpu.memory_space<vmem>>, vector<128x1xf32>
      tpu.vector_store %arg11[%c0_49, %c0_50], %75 {strides = array<i32>} : memref<128x1xf32, #tpu.memory_space<vmem>>, vector<128x1xf32>,
    } else {
    }
    %c0 = arith.constant 0 : index
    %c0_1 = arith.constant 0 : index
    %3 = vector.load %arg12[%c0, %c0_1] : memref<128x128xbf16, #tpu.memory_space<vmem>>, vector<128x128xbf16>
    %c0_2 = arith.constant 0 : index
    %c0_3 = arith.constant 0 : index
    %4 = vector.load %arg4[%c0_2, %c0_3] : memref<128x128xbf16, #tpu.memory_space<vmem>>, vector<128x128xbf16>
    %cst = arith.constant dense<0.000000e+00> : vector<128x128xf32>
    %5 = tpu.matmul %3, %4, %cst {dimension_numbers = #tpu.dot_dimension_numbers<[1], [1], [0], [0], [0, 0, 1, 0], [], []>} : vector<128x128xbf16>, vector<128x128xbf16>, vector<128x128xf32> -> vector<128x128xf32>
    %c128_i32 = arith.constant 128 : i32
    %6 = arith.muli %arg0, %c128_i32 : i32
    %7 = tpu.iota {dimensions = array<i32: 0>} : vector<128x128xi32>
    %8 = vector.broadcast %6 : i32 to vector<128x128xi32>
    %9 = arith.addi %8, %7 : vector<128x128xi32>
    %c128_i32_4 = arith.constant 128 : i32
    %10 = arith.muli %arg1, %c128_i32_4 : i32
    %11 = tpu.iota {dimensions = array<i32: 1>} : vector<128x128xi32>
    %12 = vector.broadcast %10 : i32 to vector<128x128xi32>
    %13 = arith.addi %12, %11 : vector<128x128xi32>
    %c0_5 = arith.constant 0 : index
    %c0_6 = arith.constant 0 : index
    %14 = vector.load %arg5[%c0_5, %c0_6] : memref<128x1xi32, #tpu.memory_space<vmem>>, vector<128x1xi32>
    %c0_7 = arith.constant 0 : index
    %c0_8 = arith.constant 0 : index
    %15 = vector.load %arg6[%c0_7, %c0_8] : memref<1x128xi32, #tpu.memory_space<vmem>>, vector<1x128xi32>
    %c-2147483648_i32 = arith.constant -2147483648 : i32
    %16 = vector.broadcast %c-2147483648_i32 : i32 to vector<1x128xi32>
    %17 = arith.cmpi ne, %15, %16 : vector<1x128xi32>
    %18 = arith.cmpi ne, %9, %13 : vector<128x128xi32>
    %19 = vector.broadcast %17 : vector<1x128xi1> to vector<128x128xi1>
    %20 = arith.andi %18, %19 : vector<128x128xi1>
    %21 = vector.broadcast %14 : vector<128x1xi32> to vector<128x128xi32>
    %22 = vector.broadcast %15 : vector<1x128xi32> to vector<128x128xi32>
    %23 = arith.cmpi eq, %21, %22 : vector<128x128xi32>
    %24 = arith.andi %20, %23 : vector<128x128xi1>
    %cst_9 = arith.constant -1.000000e+30 : f32
    %25 = vector.broadcast %cst_9 : f32 to vector<128x128xf32>
    %26 = arith.select %20, %5, %25 : vector<128x128xi1>, vector<128x128xf32>
    %cst_10 = arith.constant dense<0xFF800000> : vector<128xf32>
    %27 = vector.multi_reduction <maximumf>, %26, %cst_10 [1] : vector<128x128xf32> to vector<128xf32>
    %28 = vector.shape_cast %27 : vector<128xf32> to vector<128x1xf32>
    %c0_11 = arith.constant 0 : index
    %c0_12 = arith.constant 0 : index
    %29 = vector.load %arg8[%c0_11, %c0_12] : memref<128x1xf32, #tpu.memory_space<vmem>>, vector<128x1xf32>
    %30 = arith.maximumf %29, %28 : vector<128x1xf32>
    %31 = vector.broadcast %30 : vector<128x1xf32> to vector<128x128xf32>
    %32 = arith.subf %5, %31 : vector<128x128xf32>
    %33 = math.exp %32 : vector<128x128xf32>
    %cst_13 = arith.constant 0.000000e+00 : f32
    %34 = vector.broadcast %cst_13 : f32 to vector<128x128xf32>
    %35 = arith.select %20, %33, %34 : vector<128x128xi1>, vector<128x128xf32>
    %36 = arith.subf %29, %30 : vector<128x1xf32>
    %37 = math.exp %36 : vector<128x1xf32>
    %c0_14 = arith.constant 0 : index
    %c0_15 = arith.constant 0 : index
    %38 = vector.load %arg9[%c0_14, %c0_15] : memref<128x1xf32, #tpu.memory_space<vmem>>, vector<128x1xf32>
    %39 = arith.mulf %37, %38 : vector<128x1xf32>
    %cst_16 = arith.constant dense<0.000000e+00> : vector<128xf32>
    %40 = vector.multi_reduction <add>, %35, %cst_16 [1] : vector<128x128xf32> to vector<128xf32>
    %41 = vector.shape_cast %40 : vector<128xf32> to vector<128x1xf32>
    %42 = arith.addf %39, %41 : vector<128x1xf32>
    %c0_17 = arith.constant 0 : index
    %c0_18 = arith.constant 0 : index
    %43 = vector.load %arg9[%c0_17, %c0_18] : memref<128x1xf32, #tpu.memory_space<vmem>>, vector<128x1xf32>
    tpu.vector_store %arg9[%c0_17, %c0_18], %42 {strides = array<i32>} : memref<128x1xf32, #tpu.memory_space<vmem>>, vector<128x1xf32>,
    %c0_19 = arith.constant 0 : index
    %c0_20 = arith.constant 0 : index
    %44 = vector.load %arg8[%c0_19, %c0_20] : memref<128x1xf32, #tpu.memory_space<vmem>>, vector<128x1xf32>
    tpu.vector_store %arg8[%c0_19, %c0_20], %30 {strides = array<i32>} : memref<128x1xf32, #tpu.memory_space<vmem>>, vector<128x1xf32>,
    %c0_21 = arith.constant 0 : index
    %c0_22 = arith.constant 0 : index
    %45 = vector.load %arg10[%c0_21, %c0_22] : memref<128x1xf32, #tpu.memory_space<vmem>>, vector<128x1xf32>
    %cst_23 = arith.constant 0.000000e+00 : f32
    %46 = vector.broadcast %cst_23 : f32 to vector<128x128xf32>
    %47 = arith.select %24, %5, %46 : vector<128x128xi1>, vector<128x128xf32>
    %cst_24 = arith.constant dense<0.000000e+00> : vector<128xf32>
    %48 = vector.multi_reduction <add>, %47, %cst_24 [1] : vector<128x128xf32> to vector<128xf32>
    %49 = vector.shape_cast %48 : vector<128xf32> to vector<128x1xf32>
    %50 = arith.addf %45, %49 : vector<128x1xf32>
    %c0_25 = arith.constant 0 : index
    %c0_26 = arith.constant 0 : index
    %51 = vector.load %arg10[%c0_25, %c0_26] : memref<128x1xf32, #tpu.memory_space<vmem>>, vector<128x1xf32>
    tpu.vector_store %arg10[%c0_25, %c0_26], %50 {strides = array<i32>} : memref<128x1xf32, #tpu.memory_space<vmem>>, vector<128x1xf32>,
    %c0_27 = arith.constant 0 : index
    %c0_28 = arith.constant 0 : index
    %52 = vector.load %arg11[%c0_27, %c0_28] : memref<128x1xf32, #tpu.memory_space<vmem>>, vector<128x1xf32>
    %53 = arith.extui %24 : vector<128x128xi1> to vector<128x128xi32>
    %54 = arith.sitofp %53 : vector<128x128xi32> to vector<128x128xf32>
    %cst_29 = arith.constant dense<0.000000e+00> : vector<128xf32>
    %55 = vector.multi_reduction <add>, %54, %cst_29 [1] : vector<128x128xf32> to vector<128xf32>
    %56 = vector.shape_cast %55 : vector<128xf32> to vector<128x1xf32>
    %57 = arith.addf %52, %56 : vector<128x1xf32>
    %c0_30 = arith.constant 0 : index
    %c0_31 = arith.constant 0 : index
    %58 = vector.load %arg11[%c0_30, %c0_31] : memref<128x1xf32, #tpu.memory_space<vmem>>, vector<128x1xf32>
    tpu.vector_store %arg11[%c0_30, %c0_31], %57 {strides = array<i32>} : memref<128x1xf32, #tpu.memory_space<vmem>>, vector<128x1xf32>,
    %c0_i32_32 = arith.constant 0 : i32
    %59 = arith.cmpi eq, %arg1, %c0_i32_32 : i32
    %60 = arith.extui %59 : i1 to i32
    %c0_i32_33 = arith.constant 0 : i32
    %61 = arith.cmpi ne, %60, %c0_i32_33 : i32
    scf.if %61 {
      %c-2147483648_i32_34 = arith.constant -2147483648 : i32
      %62 = vector.broadcast %c-2147483648_i32_34 : i32 to vector<128x1xi32>
      %63 = arith.cmpi ne, %14, %62 : vector<128x1xi32>
      %c0_35 = arith.constant 0 : index
      %c0_36 = arith.constant 0 : index
      %64 = vector.load %arg8[%c0_35, %c0_36] : memref<128x1xf32, #tpu.memory_space<vmem>>, vector<128x1xf32>
      %c0_37 = arith.constant 0 : index
      %c0_38 = arith.constant 0 : index
      %65 = vector.load %arg9[%c0_37, %c0_38] : memref<128x1xf32, #tpu.memory_space<vmem>>, vector<128x1xf32>
      %66 = math.log %65 : vector<128x1xf32>
      %67 = arith.addf %64, %66 : vector<128x1xf32>
      %c0_39 = arith.constant 0 : index
      %c0_40 = arith.constant 0 : index
      %68 = vector.load %arg11[%c0_39, %c0_40] : memref<128x1xf32, #tpu.memory_space<vmem>>, vector<128x1xf32>
      %c0_41 = arith.constant 0 : index
      %c0_42 = arith.constant 0 : index
      %69 = vector.load %arg10[%c0_41, %c0_42] : memref<128x1xf32, #tpu.memory_space<vmem>>, vector<128x1xf32>
      %70 = arith.mulf %68, %67 : vector<128x1xf32>
      %71 = arith.subf %69, %70 : vector<128x1xf32>
      %72 = arith.divf %71, %68 : vector<128x1xf32>
      %cst_43 = arith.constant 0.000000e+00 : f32
      %73 = vector.broadcast %cst_43 : f32 to vector<128x1xf32>
      %74 = arith.select %63, %72, %73 : vector<128x1xi1>, vector<128x1xf32>
      %c0_44 = arith.constant 0 : index
      %c0_45 = arith.constant 0 : index
      %75 = vector.load %arg7[%c0_44, %c0_45] : memref<128x1xf32, #tpu.memory_space<vmem>>, vector<128x1xf32>
      tpu.vector_store %arg7[%c0_44, %c0_45], %74 {strides = array<i32>} : memref<128x1xf32, #tpu.memory_space<vmem>>, vector<128x1xf32>,
    } else {
    }
    return
  }
  func.func @transform_0(%arg0: i32, %arg1: i32) -> i32 {
    %c0_i32 = arith.constant 0 : i32
    %c0_i32_0 = arith.constant 0 : i32
    return %c0_i32 : i32
  }
  func.func @transform_1(%arg0: i32, %arg1: i32) -> (i32, i32) {
    %c0_i32 = arith.constant 0 : i32
    %c0_i32_0 = arith.constant 0 : i32
    return %arg0, %c0_i32 : i32, i32
  }
  func.func @transform_2(%arg0: i32, %arg1: i32) -> (i32, i32) {
    %c0_i32 = arith.constant 0 : i32
    %c0_i32_0 = arith.constant 0 : i32
    return %arg1, %c0_i32 : i32, i32
  }
  func.func @transform_3(%arg0: i32, %arg1: i32) -> (i32, i32) {
    %c0_i32 = arith.constant 0 : i32
    %c0_i32_0 = arith.constant 0 : i32
    return %arg0, %c0_i32 : i32, i32
  }
  func.func @transform_4(%arg0: i32, %arg1: i32) -> (i32, i32) {
    %c0_i32 = arith.constant 0 : i32
    %c0_i32_0 = arith.constant 0 : i32
    return %c0_i32, %arg1 : i32, i32
  }
  func.func @transform_5(%arg0: i32, %arg1: i32) -> (i32, i32) {
    %c0_i32 = arith.constant 0 : i32
    %c0_i32_0 = arith.constant 0 : i32
    return %arg0, %c0_i32 : i32, i32
  }
}

</mosaic_0001>

<llo_original>
// kernel: tpu_custom_call.1
$region0: #{tpu_custom_call.1}
  #allocation0 [shape = 'u32[]', space=smem, size = 0x4, offset = 0x4, fixed_abs, tag = 'smem constant byte address 0x4 - core index']
  #allocation1 [shape = 'u32[72,128]{1,0:T(1,128)}', space=vmem, size = 0x9000, scoped, tag = 'internal scratch']
  #allocation2 [shape = 'f32[128,1]{1,0:T(8,128)}', space=vmem, size = 0x10000, scoped, tag = 'scratch operand']
  #allocation3 [shape = 'f32[128,1]{1,0:T(8,128)}', space=vmem, size = 0x10000, scoped, tag = 'scratch operand']
  #allocation4 [shape = 'f32[128,1]{1,0:T(8,128)}', space=vmem, size = 0x10000, scoped, tag = 'scratch operand']
  #allocation5 [shape = 'f32[128,1]{1,0:T(8,128)}', space=vmem, size = 0x10000, scoped, tag = 'scratch operand']
  #allocation6 [shape = 'bf16[128,128]{1,0:T(8,128)(2,1)}', space=vmem, size = 0x8000, scoped, tag = 'scratch operand']
  #allocation7 [shape = 'f32[1]{0:T(128)S(6)}', space=smem, size = 0x200, scoped, tag = 'scoped memory for tpu_custom_call.1']
  %s0 = inlined_call_operand.<no memory space> [shape: f32[1], index: 0, kind: input, shape index: {}]
  %s1 = inlined_call_operand.vmem [shape: bf16[128,128], index: 1, kind: input, shape index: {}]
  %s2 = inlined_call_operand.vmem [shape: bf16[128,128], index: 2, kind: input, shape index: {}]
  %s3 = inlined_call_operand.vmem [shape: s32[128,1], index: 3, kind: input, shape index: {}]
  %s4 = inlined_call_operand.vmem [shape: s32[1,128], index: 4, kind: input, shape index: {}]
  %s5 = inlined_call_operand.vmem [shape: f32[128,1], index: 5, kind: output, shape index: {}]
  %s6 = sld [smem:[#allocation0]]
  $region38: #{tpu_custom_call.1} parent=0
    _
  %s8 = ssub.s32 1, %s6
  %s9 = scalar_select 0, %s8, %s6
  %10 = sst [smem:[#allocation7]] %s0
  // Predicated region
  $region2: #{tpu_custom_call.1} parent=0 // pred_check
    _
  $region3: #{tpu_custom_call.1} parent=0 // pred_check_branch
    %12 = sbr.rel (0) target = $region5
  $region4: #{tpu_custom_call.1} parent=0 // pred_region
    _
  $region5: #{tpu_custom_call.1} parent=0 // pred_fallthru
    _
  // Predicated region
  $region6: #{tpu_custom_call.1} parent=0 // pred_check
    _
  $region7: #{tpu_custom_call.1} parent=0 // pred_check_branch
    %14 = sbr.rel (0) target = $region9
  $region8: #{tpu_custom_call.1} parent=0 // pred_region
    _
  $region9: #{tpu_custom_call.1} parent=0 // pred_fallthru
    _
  // Predicated region
  $region10: #{tpu_custom_call.1} parent=0 // pred_check
    _
  $region11: #{tpu_custom_call.1} parent=0 // pred_check_branch
    %16 = sbr.rel (0) target = $region13
  $region12: #{tpu_custom_call.1} parent=0 // pred_region
    _
  $region13: #{tpu_custom_call.1} parent=0 // pred_fallthru
    _
  // Predicated region
  $region14: #{tpu_custom_call.1} parent=0 // pred_check
    _
  $region15: #{tpu_custom_call.1} parent=0 // pred_check_branch
    %18 = sbr.rel (0) target = $region17
  $region16: #{tpu_custom_call.1} parent=0 // pred_region
    _
  $region17: #{tpu_custom_call.1} parent=0 // pred_fallthru
    _
  // Predicated region
  $region18: #{tpu_custom_call.1} parent=0 // pred_check
    _
  $region19: #{tpu_custom_call.1} parent=0 // pred_check_branch
    %20 = sbr.rel (0) target = $region21
  $region20: #{tpu_custom_call.1} parent=0 // pred_region
    _
  $region21: #{tpu_custom_call.1} parent=0 // pred_fallthru
    _
  %p21 = scmp.eq.s32.totalorder 0, 0
  // Predicated region
  $region22: #{tpu_custom_call.1} parent=0 // pred_check
    %p22 = pneg %p21
  $region23: #{tpu_custom_call.1} parent=0 // pred_check_branch
    %24 = sbr.rel (%p22) target = $region25
  $region24: #{tpu_custom_call.1} parent=0 // pred_region
    %s25 = sld [smem:[#allocation7]]
    %v26 = vld [vmem:[%s1] sm:$0xf]
    %v27 = vld [vmem:[%s1 + $0x4] sm:$0xf]
    %v28 = vld [vmem:[%s1 + $0x8] sm:$0xf]
    %v29 = vld [vmem:[%s1 + $0xc] sm:$0xf]
    %v30 = vld [vmem:[%s1 + $0x10] sm:$0xf]
    %v31 = vld [vmem:[%s1 + $0x14] sm:$0xf]
    %v32 = vld [vmem:[%s1 + $0x18] sm:$0xf]
    %v33 = vld [vmem:[%s1 + $0x1c] sm:$0xf]
    %v34 = vld [vmem:[%s1 + $0x20] sm:$0xf]
    %v35 = vld [vmem:[%s1 + $0x24] sm:$0xf]
    %v36 = vld [vmem:[%s1 + $0x28] sm:$0xf]
    %v37 = vld [vmem:[%s1 + $0x2c] sm:$0xf]
    %v38 = vld [vmem:[%s1 + $0x30] sm:$0xf]
    %v39 = vld [vmem:[%s1 + $0x34] sm:$0xf]
    %v40 = vld [vmem:[%s1 + $0x38] sm:$0xf]
    %v41 = vld [vmem:[%s1 + $0x3c] sm:$0xf]
    %v42 = vunpack.c.l.bf16 %v26
    %v43 = vunpack.c.l.bf16 %v27
    %v44 = vunpack.c.l.bf16 %v28
    %v45 = vunpack.c.l.bf16 %v29
    %v46 = vunpack.c.l.bf16 %v30
    %v47 = vunpack.c.l.bf16 %v31
    %v48 = vunpack.c.l.bf16 %v32
    %v49 = vunpack.c.l.bf16 %v33
    %v50 = vunpack.c.l.bf16 %v34
    %v51 = vunpack.c.l.bf16 %v35
    %v52 = vunpack.c.l.bf16 %v36
    %v53 = vunpack.c.l.bf16 %v37
    %v54 = vunpack.c.l.bf16 %v38
    %v55 = vunpack.c.l.bf16 %v39
    %v56 = vunpack.c.l.bf16 %v40
    %v57 = vunpack.c.l.bf16 %v41
    %v58 = vstv %s25
    %v59 = vmul.f32 %v42, %v58
    %v60 = vmul.f32 %v43, %v58
    %v61 = vmul.f32 %v44, %v58
    %v62 = vmul.f32 %v45, %v58
    %v63 = vmul.f32 %v46, %v58
    %v64 = vmul.f32 %v47, %v58
    %v65 = vmul.f32 %v48, %v58
    %v66 = vmul.f32 %v49, %v58
    %v67 = vmul.f32 %v50, %v58
    %v68 = vmul.f32 %v51, %v58
    %v69 = vmul.f32 %v52, %v58
    %v70 = vmul.f32 %v53, %v58
    %v71 = vmul.f32 %v54, %v58
    %v72 = vmul.f32 %v55, %v58
    %v73 = vmul.f32 %v56, %v58
    %v74 = vmul.f32 %v57, %v58
    %v75 = vpack.c.bf16 %v59, %v59
    %v76 = vpack.c.bf16 %v60, %v60
    %v77 = vpack.c.bf16 %v61, %v61
    %v78 = vpack.c.bf16 %v62, %v62
    %v79 = vpack.c.bf16 %v63, %v63
    %v80 = vpack.c.bf16 %v64, %v64
    %v81 = vpack.c.bf16 %v65, %v65
    %v82 = vpack.c.bf16 %v66, %v66
    %v83 = vpack.c.bf16 %v67, %v67
    %v84 = vpack.c.bf16 %v68, %v68
    %v85 = vpack.c.bf16 %v69, %v69
    %v86 = vpack.c.bf16 %v70, %v70
    %v87 = vpack.c.bf16 %v71, %v71
    %v88 = vpack.c.bf16 %v72, %v72
    %v89 = vpack.c.bf16 %v73, %v73
    %v90 = vpack.c.bf16 %v74, %v74
    %91 = vst [vmem:[#allocation6] sm:$0xf] %v75
    %92 = vst [vmem:[#allocation6 + $0x4] sm:$0xf] %v76
    %93 = vst [vmem:[#allocation6 + $0x8] sm:$0xf] %v77
    %94 = vst [vmem:[#allocation6 + $0xc] sm:$0xf] %v78
    %95 = vst [vmem:[#allocation6 + $0x10] sm:$0xf] %v79
    %96 = vst [vmem:[#allocation6 + $0x14] sm:$0xf] %v80
    %97 = vst [vmem:[#allocation6 + $0x18] sm:$0xf] %v81
    %98 = vst [vmem:[#allocation6 + $0x1c] sm:$0xf] %v82
    %99 = vst [vmem:[#allocation6 + $0x20] sm:$0xf] %v83
    %100 = vst [vmem:[#allocation6 + $0x24] sm:$0xf] %v84
    %101 = vst [vmem:[#allocation6 + $0x28] sm:$0xf] %v85
    %102 = vst [vmem:[#allocation6 + $0x2c] sm:$0xf] %v86
    %103 = vst [vmem:[#allocation6 + $0x30] sm:$0xf] %v87
    %104 = vst [vmem:[#allocation6 + $0x34] sm:$0xf] %v88
    %105 = vst [vmem:[#allocation6 + $0x38] sm:$0xf] %v89
    %106 = vst [vmem:[#allocation6 + $0x3c] sm:$0xf] %v90
    %vm107 = vcmask 7168
    %108 = vst.msk [vmem:[#allocation2] sm:$0xff] %vm107, -1e+30
    %109 = vst.msk [vmem:[#allocation2 + $0x8] sm:$0xff] %vm107, -1e+30
    %110 = vst.msk [vmem:[#allocation2 + $0x10] sm:$0xff] %vm107, -1e+30
    %111 = vst.msk [vmem:[#allocation2 + $0x18] sm:$0xff] %vm107, -1e+30
    %112 = vst.msk [vmem:[#allocation2 + $0x20] sm:$0xff] %vm107, -1e+30
    %113 = vst.msk [vmem:[#allocation2 + $0x28] sm:$0xff] %vm107, -1e+30
    %114 = vst.msk [vmem:[#allocation2 + $0x30] sm:$0xff] %vm107, -1e+30
    %115 = vst.msk [vmem:[#allocation2 + $0x38] sm:$0xff] %vm107, -1e+30
    %116 = vst.msk [vmem:[#allocation2 + $0x40] sm:$0xff] %vm107, -1e+30
    %117 = vst.msk [vmem:[#allocation2 + $0x48] sm:$0xff] %vm107, -1e+30
    %118 = vst.msk [vmem:[#allocation2 + $0x50] sm:$0xff] %vm107, -1e+30
    %119 = vst.msk [vmem:[#allocation2 + $0x58] sm:$0xff] %vm107, -1e+30
    %120 = vst.msk [vmem:[#allocation2 + $0x60] sm:$0xff] %vm107, -1e+30
    %121 = vst.msk [vmem:[#allocation2 + $0x68] sm:$0xff] %vm107, -1e+30
    %122 = vst.msk [vmem:[#allocation2 + $0x70] sm:$0xff] %vm107, -1e+30
    %123 = vst.msk [vmem:[#allocation2 + $0x78] sm:$0xff] %vm107, -1e+30
    %124 = vst.msk [vmem:[#allocation3] sm:$0xff] %vm107, 0.0
    %125 = vst.msk [vmem:[#allocation3 + $0x8] sm:$0xff] %vm107, 0.0
    %126 = vst.msk [vmem:[#allocation3 + $0x10] sm:$0xff] %vm107, 0.0
    %127 = vst.msk [vmem:[#allocation3 + $0x18] sm:$0xff] %vm107, 0.0
    %128 = vst.msk [vmem:[#allocation3 + $0x20] sm:$0xff] %vm107, 0.0
    %129 = vst.msk [vmem:[#allocation3 + $0x28] sm:$0xff] %vm107, 0.0
    %130 = vst.msk [vmem:[#allocation3 + $0x30] sm:$0xff] %vm107, 0.0
    %131 = vst.msk [vmem:[#allocation3 + $0x38] sm:$0xff] %vm107, 0.0
    %132 = vst.msk [vmem:[#allocation3 + $0x40] sm:$0xff] %vm107, 0.0
    %133 = vst.msk [vmem:[#allocation3 + $0x48] sm:$0xff] %vm107, 0.0
    %134 = vst.msk [vmem:[#allocation3 + $0x50] sm:$0xff] %vm107, 0.0
    %135 = vst.msk [vmem:[#allocation3 + $0x58] sm:$0xff] %vm107, 0.0
    %136 = vst.msk [vmem:[#allocation3 + $0x60] sm:$0xff] %vm107, 0.0
    %137 = vst.msk [vmem:[#allocation3 + $0x68] sm:$0xff] %vm107, 0.0
    %138 = vst.msk [vmem:[#allocation3 + $0x70] sm:$0xff] %vm107, 0.0
    %139 = vst.msk [vmem:[#allocation3 + $0x78] sm:$0xff] %vm107, 0.0
    %140 = vst.msk [vmem:[#allocation4] sm:$0xff] %vm107, 0.0
    %141 = vst.msk [vmem:[#allocation4 + $0x8] sm:$0xff] %vm107, 0.0
    %142 = vst.msk [vmem:[#allocation4 + $0x10] sm:$0xff] %vm107, 0.0
    %143 = vst.msk [vmem:[#allocation4 + $0x18] sm:$0xff] %vm107, 0.0
    %144 = vst.msk [vmem:[#allocation4 + $0x20] sm:$0xff] %vm107, 0.0
    %145 = vst.msk [vmem:[#allocation4 + $0x28] sm:$0xff] %vm107, 0.0
    %146 = vst.msk [vmem:[#allocation4 + $0x30] sm:$0xff] %vm107, 0.0
    %147 = vst.msk [vmem:[#allocation4 + $0x38] sm:$0xff] %vm107, 0.0
    %148 = vst.msk [vmem:[#allocation4 + $0x40] sm:$0xff] %vm107, 0.0
    %149 = vst.msk [vmem:[#allocation4 + $0x48] sm:$0xff] %vm107, 0.0
    %150 = vst.msk [vmem:[#allocation4 + $0x50] sm:$0xff] %vm107, 0.0
    %151 = vst.msk [vmem:[#allocation4 + $0x58] sm:$0xff] %vm107, 0.0
    %152 = vst.msk [vmem:[#allocation4 + $0x60] sm:$0xff] %vm107, 0.0
    %153 = vst.msk [vmem:[#allocation4 + $0x68] sm:$0xff] %vm107, 0.0
    %154 = vst.msk [vmem:[#allocation4 + $0x70] sm:$0xff] %vm107, 0.0
    %155 = vst.msk [vmem:[#allocation4 + $0x78] sm:$0xff] %vm107, 0.0
    %156 = vst.msk [vmem:[#allocation5] sm:$0xff] %vm107, 0.0
    %157 = vst.msk [vmem:[#allocation5 + $0x8] sm:$0xff] %vm107, 0.0
    %158 = vst.msk [vmem:[#allocation5 + $0x10] sm:$0xff] %vm107, 0.0
    %159 = vst.msk [vmem:[#allocation5 + $0x18] sm:$0xff] %vm107, 0.0
    %160 = vst.msk [vmem:[#allocation5 + $0x20] sm:$0xff] %vm107, 0.0
    %161 = vst.msk [vmem:[#allocation5 + $0x28] sm:$0xff] %vm107, 0.0
    %162 = vst.msk [vmem:[#allocation5 + $0x30] sm:$0xff] %vm107, 0.0
    %163 = vst.msk [vmem:[#allocation5 + $0x38] sm:$0xff] %vm107, 0.0
    %164 = vst.msk [vmem:[#allocation5 + $0x40] sm:$0xff] %vm107, 0.0
    %165 = vst.msk [vmem:[#allocation5 + $0x48] sm:$0xff] %vm107, 0.0
    %166 = vst.msk [vmem:[#allocation5 + $0x50] sm:$0xff] %vm107, 0.0
    %167 = vst.msk [vmem:[#allocation5 + $0x58] sm:$0xff] %vm107, 0.0
    %168 = vst.msk [vmem:[#allocation5 + $0x60] sm:$0xff] %vm107, 0.0
    %169 = vst.msk [vmem:[#allocation5 + $0x68] sm:$0xff] %vm107, 0.0
    %170 = vst.msk [vmem:[#allocation5 + $0x70] sm:$0xff] %vm107, 0.0
    %171 = vst.msk [vmem:[#allocation5 + $0x78] sm:$0xff] %vm107, 0.0
  $region25: #{tpu_custom_call.1} parent=0 // pred_fallthru
    _
  %v172 = vld [vmem:[#allocation6] sm:$0xf]
  %v173 = vld [vmem:[#allocation6 + $0x4] sm:$0xf]
  %v174 = vld [vmem:[#allocation6 + $0x8] sm:$0xf]
  %v175 = vld [vmem:[#allocation6 + $0xc] sm:$0xf]
  %v176 = vld [vmem:[#allocation6 + $0x10] sm:$0xf]
  %v177 = vld [vmem:[#allocation6 + $0x14] sm:$0xf]
  %v178 = vld [vmem:[#allocation6 + $0x18] sm:$0xf]
  %v179 = vld [vmem:[#allocation6 + $0x1c] sm:$0xf]
  %v180 = vld [vmem:[#allocation6 + $0x20] sm:$0xf]
  %v181 = vld [vmem:[#allocation6 + $0x24] sm:$0xf]
  %v182 = vld [vmem:[#allocation6 + $0x28] sm:$0xf]
  %v183 = vld [vmem:[#allocation6 + $0x2c] sm:$0xf]
  %v184 = vld [vmem:[#allocation6 + $0x30] sm:$0xf]
  %v185 = vld [vmem:[#allocation6 + $0x34] sm:$0xf]
  %v186 = vld [vmem:[#allocation6 + $0x38] sm:$0xf]
  %v187 = vld [vmem:[#allocation6 + $0x3c] sm:$0xf]
  %v188 = vld [vmem:[%s2] sm:$0xf]
  %v189 = vld [vmem:[%s2 + $0x4] sm:$0xf]
  %v190 = vld [vmem:[%s2 + $0x8] sm:$0xf]
  %v191 = vld [vmem:[%s2 + $0xc] sm:$0xf]
  %v192 = vld [vmem:[%s2 + $0x10] sm:$0xf]
  %v193 = vld [vmem:[%s2 + $0x14] sm:$0xf]
  %v194 = vld [vmem:[%s2 + $0x18] sm:$0xf]
  %v195 = vld [vmem:[%s2 + $0x1c] sm:$0xf]
  %v196 = vld [vmem:[%s2 + $0x20] sm:$0xf]
  %v197 = vld [vmem:[%s2 + $0x24] sm:$0xf]
  %v198 = vld [vmem:[%s2 + $0x28] sm:$0xf]
  %v199 = vld [vmem:[%s2 + $0x2c] sm:$0xf]
  %v200 = vld [vmem:[%s2 + $0x30] sm:$0xf]
  %v201 = vld [vmem:[%s2 + $0x34] sm:$0xf]
  %v202 = vld [vmem:[%s2 + $0x38] sm:$0xf]
  %v203 = vld [vmem:[%s2 + $0x3c] sm:$0xf]
  %v220 = vunpack.c.l.b16 %v172
  %v221 = vunpack.c.l.b16 %v173
  %v222 = vunpack.c.l.b16 %v174
  %v223 = vunpack.c.l.b16 %v175
  %v224 = vunpack.c.l.b16 %v176
  %v225 = vunpack.c.l.b16 %v177
  %v226 = vunpack.c.l.b16 %v178
  %v227 = vunpack.c.l.b16 %v179
  %v228 = vunpack.c.l.b16 %v180
  %v229 = vunpack.c.l.b16 %v181
  %v230 = vunpack.c.l.b16 %v182
  %v231 = vunpack.c.l.b16 %v183
  %v232 = vunpack.c.l.b16 %v184
  %v233 = vunpack.c.l.b16 %v185
  %v234 = vunpack.c.l.b16 %v186
  %v235 = vunpack.c.l.b16 %v187
  %v236 = vpack.c.b16 %v221, %v220
  %v237 = vpack.c.b16 %v223, %v222
  %v238 = vpack.c.b16 %v225, %v224
  %v239 = vpack.c.b16 %v227, %v226
  %v240 = vpack.c.b16 %v229, %v228
  %v241 = vpack.c.b16 %v231, %v230
  %v242 = vpack.c.b16 %v233, %v232
  %v243 = vpack.c.b16 %v235, %v234
  %v268 = vunpack.c.l.b16 %v188
  %v269 = vunpack.c.l.b16 %v189
  %v270 = vunpack.c.l.b16 %v190
  %v271 = vunpack.c.l.b16 %v191
  %v272 = vunpack.c.l.b16 %v192
  %v273 = vunpack.c.l.b16 %v193
  %v274 = vunpack.c.l.b16 %v194
  %v275 = vunpack.c.l.b16 %v195
  %v276 = vunpack.c.l.b16 %v196
  %v277 = vunpack.c.l.b16 %v197
  %v278 = vunpack.c.l.b16 %v198
  %v279 = vunpack.c.l.b16 %v199
  %v280 = vunpack.c.l.b16 %v200
  %v281 = vunpack.c.l.b16 %v201
  %v282 = vunpack.c.l.b16 %v202
  %v283 = vunpack.c.l.b16 %v203
  %v284 = vpack.c.b16 %v269, %v268
  %v285 = vpack.c.b16 %v271, %v270
  %v286 = vpack.c.b16 %v273, %v272
  %v287 = vpack.c.b16 %v275, %v274
  %v288 = vpack.c.b16 %v277, %v276
  %v289 = vpack.c.b16 %v279, %v278
  %v290 = vpack.c.b16 %v281, %v280
  %v291 = vpack.c.b16 %v283, %v282
  %300 = vmatpush.bf16.xpose.msra.mxu0 %v291
  %301 = vmatpush.bf16.xpose.msra.mxu0 %v290
  %302 = vmatpush.bf16.xpose.msra.mxu0 %v289
  %303 = vmatpush.bf16.xpose.msra.mxu0 %v288
  %304 = vmatpush.bf16.xpose.msra.mxu0 %v287
  %305 = vmatpush.bf16.xpose.msra.mxu0 %v286
  %306 = vmatpush.bf16.xpose.msra.mxu0 %v285
  %307 = vmatpush.bf16.xpose.msra.mxu0 %v284
  %308 = vmatmul.bf16.gmra.mxu0 %v236
  %v309 = vpop.f32.mrf.mxu0
  %v310 = vadd.f32 0.0, %v309
  %v311 = vpop.f32.mrf.mxu0
  %v312 = vadd.f32 0.0, %v311
  %313 = vmatmul.bf16.gmra.mxu0 %v237
  %v314 = vpop.f32.mrf.mxu0
  %v315 = vadd.f32 0.0, %v314
  %v316 = vpop.f32.mrf.mxu0
  %v317 = vadd.f32 0.0, %v316
  %318 = vmatmul.bf16.gmra.mxu0 %v238
  %v319 = vpop.f32.mrf.mxu0
  %v320 = vadd.f32 0.0, %v319
  %v321 = vpop.f32.mrf.mxu0
  %v322 = vadd.f32 0.0, %v321
  %323 = vmatmul.bf16.gmra.mxu0 %v239
  %v324 = vpop.f32.mrf.mxu0
  %v325 = vadd.f32 0.0, %v324
  %v326 = vpop.f32.mrf.mxu0
  %v327 = vadd.f32 0.0, %v326
  %328 = vmatmul.bf16.gmra.mxu0 %v240
  %v329 = vpop.f32.mrf.mxu0
  %v330 = vadd.f32 0.0, %v329
  %v331 = vpop.f32.mrf.mxu0
  %v332 = vadd.f32 0.0, %v331
  %333 = vmatmul.bf16.gmra.mxu0 %v241
  %v334 = vpop.f32.mrf.mxu0
  %v335 = vadd.f32 0.0, %v334
  %v336 = vpop.f32.mrf.mxu0
  %v337 = vadd.f32 0.0, %v336
  %338 = vmatmul.bf16.gmra.mxu0 %v242
  %v339 = vpop.f32.mrf.mxu0
  %v340 = vadd.f32 0.0, %v339
  %v341 = vpop.f32.mrf.mxu0
  %v342 = vadd.f32 0.0, %v341
  %343 = vmatmul.bf16.gmra.mxu0 %v243
  %v344 = vpop.f32.mrf.mxu0
  %v345 = vadd.f32 0.0, %v344
  %v346 = vpop.f32.mrf.mxu0
  %v347 = vadd.f32 0.0, %v346
  %348 = vdwg.mxu0
  %s349 = smul.u32 0, 128
  %v350 = vlaneseq
  %v351 = vshrl.u32 %v350, 7
  %v352 = vadd.s32 %v351, 8
  %v353 = vadd.s32 %v351, 16
  %v354 = vadd.s32 %v351, 24
  %v355 = vadd.s32 %v351, 32
  %v356 = vadd.s32 %v351, 40
  %v357 = vadd.s32 %v351, 48
  %v358 = vadd.s32 %v351, 56
  %v359 = vadd.s32 %v351, 64
  %v360 = vadd.s32 %v351, 72
  %v361 = vadd.s32 %v351, 80
  %v362 = vadd.s32 %v351, 88
  %v363 = vadd.s32 %v351, 96
  %v364 = vadd.s32 %v351, 104
  %v365 = vadd.s32 %v351, 112
  %v366 = vadd.s32 %v351, 120
  %v367 = vstv %s349
  %v368 = vadd.s32 %v367, %v351
  %v369 = vadd.s32 %v367, %v352
  %v370 = vadd.s32 %v367, %v353
  %v371 = vadd.s32 %v367, %v354
  %v372 = vadd.s32 %v367, %v355
  %v373 = vadd.s32 %v367, %v356
  %v374 = vadd.s32 %v367, %v357
  %v375 = vadd.s32 %v367, %v358
  %v376 = vadd.s32 %v367, %v359
  %v377 = vadd.s32 %v367, %v360
  %v378 = vadd.s32 %v367, %v361
  %v379 = vadd.s32 %v367, %v362
  %v380 = vadd.s32 %v367, %v363
  %v381 = vadd.s32 %v367, %v364
  %v382 = vadd.s32 %v367, %v365
  %v383 = vadd.s32 %v367, %v366
  %s384 = smul.u32 0, 128
  %v385 = vlaneseq
  %v386 = vand.u32 %v385, 127
  %v387 = vstv %s384
  %v388 = vadd.s32 %v387, %v386
  %v389 = vld [vmem:[%s3] sm:$0xff]
  %v390 = vld [vmem:[%s3 + $0x8] sm:$0xff]
  %v391 = vld [vmem:[%s3 + $0x10] sm:$0xff]
  %v392 = vld [vmem:[%s3 + $0x18] sm:$0xff]
  %v393 = vld [vmem:[%s3 + $0x20] sm:$0xff]
  %v394 = vld [vmem:[%s3 + $0x28] sm:$0xff]
  %v395 = vld [vmem:[%s3 + $0x30] sm:$0xff]
  %v396 = vld [vmem:[%s3 + $0x38] sm:$0xff]
  %v397 = vld [vmem:[%s3 + $0x40] sm:$0xff]
  %v398 = vld [vmem:[%s3 + $0x48] sm:$0xff]
  %v399 = vld [vmem:[%s3 + $0x50] sm:$0xff]
  %v400 = vld [vmem:[%s3 + $0x58] sm:$0xff]
  %v401 = vld [vmem:[%s3 + $0x60] sm:$0xff]
  %v402 = vld [vmem:[%s3 + $0x68] sm:$0xff]
  %v403 = vld [vmem:[%s3 + $0x70] sm:$0xff]
  %v404 = vld [vmem:[%s3 + $0x78] sm:$0xff]
  %v405 = vld [vmem:[%s4] sm:$0x1]
  %vm406 = vcmp.ne.s32.totalorder %v405, 2147483648
  %vm407 = vcmp.ne.s32.totalorder %v368, %v388
  %vm408 = vcmp.ne.s32.totalorder %v369, %v388
  %vm409 = vcmp.ne.s32.totalorder %v370, %v388
  %vm410 = vcmp.ne.s32.totalorder %v371, %v388
  %vm411 = vcmp.ne.s32.totalorder %v372, %v388
  %vm412 = vcmp.ne.s32.totalorder %v373, %v388
  %vm413 = vcmp.ne.s32.totalorder %v374, %v388
  %vm414 = vcmp.ne.s32.totalorder %v375, %v388
  %vm415 = vcmp.ne.s32.totalorder %v376, %v388
  %vm416 = vcmp.ne.s32.totalorder %v377, %v388
  %vm417 = vcmp.ne.s32.totalorder %v378, %v388
  %vm418 = vcmp.ne.s32.totalorder %v379, %v388
  %vm419 = vcmp.ne.s32.totalorder %v380, %v388
  %vm420 = vcmp.ne.s32.totalorder %v381, %v388
  %vm421 = vcmp.ne.s32.totalorder %v382, %v388
  %vm422 = vcmp.ne.s32.totalorder %v383, %v388
  %v423 = vsel %vm406, 1, 0
  %v424 = vperm.slane %v423, 0
  %vm425 = vcmp.eq.s32.totalorder %v424, 1
  %vm426 = vmand %vm407, %vm425
  %vm427 = vmand %vm408, %vm425
  %vm428 = vmand %vm409, %vm425
  %vm429 = vmand %vm410, %vm425
  %vm430 = vmand %vm411, %vm425
  %vm431 = vmand %vm412, %vm425
  %vm432 = vmand %vm413, %vm425
  %vm433 = vmand %vm414, %vm425
  %vm434 = vmand %vm415, %vm425
  %vm435 = vmand %vm416, %vm425
  %vm436 = vmand %vm417, %vm425
  %vm437 = vmand %vm418, %vm425
  %vm438 = vmand %vm419, %vm425
  %vm439 = vmand %vm420, %vm425
  %vm440 = vmand %vm421, %vm425
  %vm441 = vmand %vm422, %vm425
  %442 = vset.pattern.permute.xlu0 0
  %443 = vperm.xlu0 %442, %v389
  %v444 = vpop.permute.xlu0 %443
  %445 = vset.pattern.permute.xlu0 0
  %446 = vperm.xlu0 %445, %v390
  %v447 = vpop.permute.xlu0 %446
  %448 = vset.pattern.permute.xlu0 0
  %449 = vperm.xlu0 %448, %v391
  %v450 = vpop.permute.xlu0 %449
  %451 = vset.pattern.permute.xlu0 0
  %452 = vperm.xlu0 %451, %v392
  %v453 = vpop.permute.xlu0 %452
  %454 = vset.pattern.permute.xlu0 0
  %455 = vperm.xlu0 %454, %v393
  %v456 = vpop.permute.xlu0 %455
  %457 = vset.pattern.permute.xlu0 0
  %458 = vperm.xlu0 %457, %v394
  %v459 = vpop.permute.xlu0 %458
  %460 = vset.pattern.permute.xlu0 0
  %461 = vperm.xlu0 %460, %v395
  %v462 = vpop.permute.xlu0 %461
  %463 = vset.pattern.permute.xlu0 0
  %464 = vperm.xlu0 %463, %v396
  %v465 = vpop.permute.xlu0 %464
  %466 = vset.pattern.permute.xlu0 0
  %467 = vperm.xlu0 %466, %v397
  %v468 = vpop.permute.xlu0 %467
  %469 = vset.pattern.permute.xlu0 0
  %470 = vperm.xlu0 %469, %v398
  %v471 = vpop.permute.xlu0 %470
  %472 = vset.pattern.permute.xlu0 0
  %473 = vperm.xlu0 %472, %v399
  %v474 = vpop.permute.xlu0 %473
  %475 = vset.pattern.permute.xlu0 0
  %476 = vperm.xlu0 %475, %v400
  %v477 = vpop.permute.xlu0 %476
  %478 = vset.pattern.permute.xlu0 0
  %479 = vperm.xlu0 %478, %v401
  %v480 = vpop.permute.xlu0 %479
  %481 = vset.pattern.permute.xlu0 0
  %482 = vperm.xlu0 %481, %v402
  %v483 = vpop.permute.xlu0 %482
  %484 = vset.pattern.permute.xlu0 0
  %485 = vperm.xlu0 %484, %v403
  %v486 = vpop.permute.xlu0 %485
  %487 = vset.pattern.permute.xlu0 0
  %488 = vperm.xlu0 %487, %v404
  %v489 = vpop.permute.xlu0 %488
  %v490 = vperm.slane %v405, 0
  %vm491 = vcmp.eq.s32.totalorder %v444, %v490
  %vm492 = vcmp.eq.s32.totalorder %v447, %v490
  %vm493 = vcmp.eq.s32.totalorder %v450, %v490
  %vm494 = vcmp.eq.s32.totalorder %v453, %v490
  %vm495 = vcmp.eq.s32.totalorder %v456, %v490
  %vm496 = vcmp.eq.s32.totalorder %v459, %v490
  %vm497 = vcmp.eq.s32.totalorder %v462, %v490
  %vm498 = vcmp.eq.s32.totalorder %v465, %v490
  %vm499 = vcmp.eq.s32.totalorder %v468, %v490
  %vm500 = vcmp.eq.s32.totalorder %v471, %v490
  %vm501 = vcmp.eq.s32.totalorder %v474, %v490
  %vm502 = vcmp.eq.s32.totalorder %v477, %v490
  %vm503 = vcmp.eq.s32.totalorder %v480, %v490
  %vm504 = vcmp.eq.s32.totalorder %v483, %v490
  %vm505 = vcmp.eq.s32.totalorder %v486, %v490
  %vm506 = vcmp.eq.s32.totalorder %v489, %v490
  %vm507 = vmand %vm426, %vm491
  %vm508 = vmand %vm427, %vm492
  %vm509 = vmand %vm428, %vm493
  %vm510 = vmand %vm429, %vm494
  %vm511 = vmand %vm430, %vm495
  %vm512 = vmand %vm431, %vm496
  %vm513 = vmand %vm432, %vm497
  %vm514 = vmand %vm433, %vm498
  %vm515 = vmand %vm434, %vm499
  %vm516 = vmand %vm435, %vm500
  %vm517 = vmand %vm436, %vm501
  %vm518 = vmand %vm437, %vm502
  %vm519 = vmand %vm438, %vm503
  %vm520 = vmand %vm439, %vm504
  %vm521 = vmand %vm440, %vm505
  %vm522 = vmand %vm441, %vm506
  %v523 = vsel %vm426, %v310, -1e+30
  %v524 = vsel %vm427, %v312, -1e+30
  %v525 = vsel %vm428, %v315, -1e+30
  %v526 = vsel %vm429, %v317, -1e+30
  %v527 = vsel %vm430, %v320, -1e+30
  %v528 = vsel %vm431, %v322, -1e+30
  %v529 = vsel %vm432, %v325, -1e+30
  %v530 = vsel %vm433, %v327, -1e+30
  %v531 = vsel %vm434, %v330, -1e+30
  %v532 = vsel %vm435, %v332, -1e+30
  %v533 = vsel %vm436, %v335, -1e+30
  %v534 = vsel %vm437, %v337, -1e+30
  %v535 = vsel %vm438, %v340, -1e+30
  %v536 = vsel %vm439, %v342, -1e+30
  %v537 = vsel %vm440, %v345, -1e+30
  %v538 = vsel %vm441, %v347, -1e+30
  %539 = vmax.xlane.f32.xlu0 %v523
  %v540 = vpop.xlane.xlu0 %539
  %541 = vmax.xlane.f32.xlu0 %v524
  %v542 = vpop.xlane.xlu0 %541
  %543 = vmax.xlane.f32.xlu0 %v525
  %v544 = vpop.xlane.xlu0 %543
  %545 = vmax.xlane.f32.xlu0 %v526
  %v546 = vpop.xlane.xlu0 %545
  %547 = vmax.xlane.f32.xlu0 %v527
  %v548 = vpop.xlane.xlu0 %547
  %549 = vmax.xlane.f32.xlu0 %v528
  %v550 = vpop.xlane.xlu0 %549
  %551 = vmax.xlane.f32.xlu0 %v529
  %v552 = vpop.xlane.xlu0 %551
  %553 = vmax.xlane.f32.xlu0 %v530
  %v554 = vpop.xlane.xlu0 %553
  %555 = vmax.xlane.f32.xlu0 %v531
  %v556 = vpop.xlane.xlu0 %555
  %557 = vmax.xlane.f32.xlu0 %v532
  %v558 = vpop.xlane.xlu0 %557
  %559 = vmax.xlane.f32.xlu0 %v533
  %v560 = vpop.xlane.xlu0 %559
  %561 = vmax.xlane.f32.xlu0 %v534
  %v562 = vpop.xlane.xlu0 %561
  %563 = vmax.xlane.f32.xlu0 %v535
  %v564 = vpop.xlane.xlu0 %563
  %565 = vmax.xlane.f32.xlu0 %v536
  %v566 = vpop.xlane.xlu0 %565
  %567 = vmax.xlane.f32.xlu0 %v537
  %v568 = vpop.xlane.xlu0 %567
  %569 = vmax.xlane.f32.xlu0 %v538
  %v570 = vpop.xlane.xlu0 %569
  %v571 = vld [vmem:[#allocation2] sm:$0xff]
  %v572 = vld [vmem:[#allocation2 + $0x8] sm:$0xff]
  %v573 = vld [vmem:[#allocation2 + $0x10] sm:$0xff]
  %v574 = vld [vmem:[#allocation2 + $0x18] sm:$0xff]
  %v575 = vld [vmem:[#allocation2 + $0x20] sm:$0xff]
  %v576 = vld [vmem:[#allocation2 + $0x28] sm:$0xff]
  %v577 = vld [vmem:[#allocation2 + $0x30] sm:$0xff]
  %v578 = vld [vmem:[#allocation2 + $0x38] sm:$0xff]
  %v579 = vld [vmem:[#allocation2 + $0x40] sm:$0xff]
  %v580 = vld [vmem:[#allocation2 + $0x48] sm:$0xff]
  %v581 = vld [vmem:[#allocation2 + $0x50] sm:$0xff]
  %v582 = vld [vmem:[#allocation2 + $0x58] sm:$0xff]
  %v583 = vld [vmem:[#allocation2 + $0x60] sm:$0xff]
  %v584 = vld [vmem:[#allocation2 + $0x68] sm:$0xff]
  %v585 = vld [vmem:[#allocation2 + $0x70] sm:$0xff]
  %v586 = vld [vmem:[#allocation2 + $0x78] sm:$0xff]
  %v587 = vmax.f32 %v571, %v540
  %v588 = vmax.f32 %v572, %v542
  %v589 = vmax.f32 %v573, %v544
  %v590 = vmax.f32 %v574, %v546
  %v591 = vmax.f32 %v575, %v548
  %v592 = vmax.f32 %v576, %v550
  %v593 = vmax.f32 %v577, %v552
  %v594 = vmax.f32 %v578, %v554
  %v595 = vmax.f32 %v579, %v556
  %v596 = vmax.f32 %v580, %v558
  %v597 = vmax.f32 %v581, %v560
  %v598 = vmax.f32 %v582, %v562
  %v599 = vmax.f32 %v583, %v564
  %v600 = vmax.f32 %v584, %v566
  %v601 = vmax.f32 %v585, %v568
  %v602 = vmax.f32 %v586, %v570
  %604 = vset.pattern.permute.xlu0 0
  %605 = vperm.xlu0 %604, %v587
  %v606 = vpop.permute.xlu0 %605
  %609 = vset.pattern.permute.xlu0 0
  %610 = vperm.xlu0 %609, %v588
  %v611 = vpop.permute.xlu0 %610
  %614 = vset.pattern.permute.xlu0 0
  %615 = vperm.xlu0 %614, %v589
  %v616 = vpop.permute.xlu0 %615
  %619 = vset.pattern.permute.xlu0 0
  %620 = vperm.xlu0 %619, %v590
  %v621 = vpop.permute.xlu0 %620
  %624 = vset.pattern.permute.xlu0 0
  %625 = vperm.xlu0 %624, %v591
  %v626 = vpop.permute.xlu0 %625
  %629 = vset.pattern.permute.xlu0 0
  %630 = vperm.xlu0 %629, %v592
  %v631 = vpop.permute.xlu0 %630
  %634 = vset.pattern.permute.xlu0 0
  %635 = vperm.xlu0 %634, %v593
  %v636 = vpop.permute.xlu0 %635
  %639 = vset.pattern.permute.xlu0 0
  %640 = vperm.xlu0 %639, %v594
  %v641 = vpop.permute.xlu0 %640
  %644 = vset.pattern.permute.xlu0 0
  %645 = vperm.xlu0 %644, %v595
  %v646 = vpop.permute.xlu0 %645
  %649 = vset.pattern.permute.xlu0 0
  %650 = vperm.xlu0 %649, %v596
  %v651 = vpop.permute.xlu0 %650
  %654 = vset.pattern.permute.xlu0 0
  %655 = vperm.xlu0 %654, %v597
  %v656 = vpop.permute.xlu0 %655
  %659 = vset.pattern.permute.xlu0 0
  %660 = vperm.xlu0 %659, %v598
  %v661 = vpop.permute.xlu0 %660
  %664 = vset.pattern.permute.xlu0 0
  %665 = vperm.xlu0 %664, %v599
  %v666 = vpop.permute.xlu0 %665
  %669 = vset.pattern.permute.xlu0 0
  %670 = vperm.xlu0 %669, %v600
  %v671 = vpop.permute.xlu0 %670
  %674 = vset.pattern.permute.xlu0 0
  %675 = vperm.xlu0 %674, %v601
  %v676 = vpop.permute.xlu0 %675
  %679 = vset.pattern.permute.xlu0 0
  %680 = vperm.xlu0 %679, %v602
  %v681 = vpop.permute.xlu0 %680
  %v683 = vsub.f32 %v310, %v606
  %v684 = vsub.f32 %v312, %v611
  %v685 = vsub.f32 %v315, %v616
  %v686 = vsub.f32 %v317, %v621
  %v687 = vsub.f32 %v320, %v626
  %v688 = vsub.f32 %v322, %v631
  %v689 = vsub.f32 %v325, %v636
  %v690 = vsub.f32 %v327, %v641
  %v691 = vsub.f32 %v330, %v646
  %v692 = vsub.f32 %v332, %v651
  %v693 = vsub.f32 %v335, %v656
  %v694 = vsub.f32 %v337, %v661
  %v695 = vsub.f32 %v340, %v666
  %v696 = vsub.f32 %v342, %v671
  %v697 = vsub.f32 %v345, %v676
  %v698 = vsub.f32 %v347, %v681
  %v699 = vmul.f32 %v683, 1.442695
  %v700 = vpow.pop %v699
  %v701 = vmul.f32 %v684, 1.442695
  %v702 = vpow.pop %v701
  %v703 = vmul.f32 %v685, 1.442695
  %v704 = vpow.pop %v703
  %v705 = vmul.f32 %v686, 1.442695
  %v706 = vpow.pop %v705
  %v707 = vmul.f32 %v687, 1.442695
  %v708 = vpow.pop %v707
  %v709 = vmul.f32 %v688, 1.442695
  %v710 = vpow.pop %v709
  %v711 = vmul.f32 %v689, 1.442695
  %v712 = vpow.pop %v711
  %v713 = vmul.f32 %v690, 1.442695
  %v714 = vpow.pop %v713
  %v715 = vmul.f32 %v691, 1.442695
  %v716 = vpow.pop %v715
  %v717 = vmul.f32 %v692, 1.442695
  %v718 = vpow.pop %v717
  %v719 = vmul.f32 %v693, 1.442695
  %v720 = vpow.pop %v719
  %v721 = vmul.f32 %v694, 1.442695
  %v722 = vpow.pop %v721
  %v723 = vmul.f32 %v695, 1.442695
  %v724 = vpow.pop %v723
  %v725 = vmul.f32 %v696, 1.442695
  %v726 = vpow.pop %v725
  %v727 = vmul.f32 %v697, 1.442695
  %v728 = vpow.pop %v727
  %v729 = vmul.f32 %v698, 1.442695
  %v730 = vpow.pop %v729
  %v731 = vsel %vm426, %v700, 0.0
  %v732 = vsel %vm427, %v702, 0.0
  %v733 = vsel %vm428, %v704, 0.0
  %v734 = vsel %vm429, %v706, 0.0
  %v735 = vsel %vm430, %v708, 0.0
  %v736 = vsel %vm431, %v710, 0.0
  %v737 = vsel %vm432, %v712, 0.0
  %v738 = vsel %vm433, %v714, 0.0
  %v739 = vsel %vm434, %v716, 0.0
  %v740 = vsel %vm435, %v718, 0.0
  %v741 = vsel %vm436, %v720, 0.0
  %v742 = vsel %vm437, %v722, 0.0
  %v743 = vsel %vm438, %v724, 0.0
  %v744 = vsel %vm439, %v726, 0.0
  %v745 = vsel %vm440, %v728, 0.0
  %v746 = vsel %vm441, %v730, 0.0
  %v747 = vsub.f32 %v571, %v587
  %v748 = vsub.f32 %v572, %v588
  %v749 = vsub.f32 %v573, %v589
  %v750 = vsub.f32 %v574, %v590
  %v751 = vsub.f32 %v575, %v591
  %v752 = vsub.f32 %v576, %v592
  %v753 = vsub.f32 %v577, %v593
  %v754 = vsub.f32 %v578, %v594
  %v755 = vsub.f32 %v579, %v595
  %v756 = vsub.f32 %v580, %v596
  %v757 = vsub.f32 %v581, %v597
  %v758 = vsub.f32 %v582, %v598
  %v759 = vsub.f32 %v583, %v599
  %v760 = vsub.f32 %v584, %v600
  %v761 = vsub.f32 %v585, %v601
  %v762 = vsub.f32 %v586, %v602
  %v763 = vmul.f32 %v747, 1.442695
  %v764 = vpow.pop %v763
  %v765 = vmul.f32 %v748, 1.442695
  %v766 = vpow.pop %v765
  %v767 = vmul.f32 %v749, 1.442695
  %v768 = vpow.pop %v767
  %v769 = vmul.f32 %v750, 1.442695
  %v770 = vpow.pop %v769
  %v771 = vmul.f32 %v751, 1.442695
  %v772 = vpow.pop %v771
  %v773 = vmul.f32 %v752, 1.442695
  %v774 = vpow.pop %v773
  %v775 = vmul.f32 %v753, 1.442695
  %v776 = vpow.pop %v775
  %v777 = vmul.f32 %v754, 1.442695
  %v778 = vpow.pop %v777
  %v779 = vmul.f32 %v755, 1.442695
  %v780 = vpow.pop %v779
  %v781 = vmul.f32 %v756, 1.442695
  %v782 = vpow.pop %v781
  %v783 = vmul.f32 %v757, 1.442695
  %v784 = vpow.pop %v783
  %v785 = vmul.f32 %v758, 1.442695
  %v786 = vpow.pop %v785
  %v787 = vmul.f32 %v759, 1.442695
  %v788 = vpow.pop %v787
  %v789 = vmul.f32 %v760, 1.442695
  %v790 = vpow.pop %v789
  %v791 = vmul.f32 %v761, 1.442695
  %v792 = vpow.pop %v791
  %v793 = vmul.f32 %v762, 1.442695
  %v794 = vpow.pop %v793
  %v795 = vld [vmem:[#allocation3] sm:$0xff]
  %v796 = vld [vmem:[#allocation3 + $0x8] sm:$0xff]
  %v797 = vld [vmem:[#allocation3 + $0x10] sm:$0xff]
  %v798 = vld [vmem:[#allocation3 + $0x18] sm:$0xff]
  %v799 = vld [vmem:[#allocation3 + $0x20] sm:$0xff]
  %v800 = vld [vmem:[#allocation3 + $0x28] sm:$0xff]
  %v801 = vld [vmem:[#allocation3 + $0x30] sm:$0xff]
  %v802 = vld [vmem:[#allocation3 + $0x38] sm:$0xff]
  %v803 = vld [vmem:[#allocation3 + $0x40] sm:$0xff]
  %v804 = vld [vmem:[#allocation3 + $0x48] sm:$0xff]
  %v805 = vld [vmem:[#allocation3 + $0x50] sm:$0xff]
  %v806 = vld [vmem:[#allocation3 + $0x58] sm:$0xff]
  %v807 = vld [vmem:[#allocation3 + $0x60] sm:$0xff]
  %v808 = vld [vmem:[#allocation3 + $0x68] sm:$0xff]
  %v809 = vld [vmem:[#allocation3 + $0x70] sm:$0xff]
  %v810 = vld [vmem:[#allocation3 + $0x78] sm:$0xff]
  %v811 = vmul.f32 %v764, %v795
  %v812 = vmul.f32 %v766, %v796
  %v813 = vmul.f32 %v768, %v797
  %v814 = vmul.f32 %v770, %v798
  %v815 = vmul.f32 %v772, %v799
  %v816 = vmul.f32 %v774, %v800
  %v817 = vmul.f32 %v776, %v801
  %v818 = vmul.f32 %v778, %v802
  %v819 = vmul.f32 %v780, %v803
  %v820 = vmul.f32 %v782, %v804
  %v821 = vmul.f32 %v784, %v805
  %v822 = vmul.f32 %v786, %v806
  %v823 = vmul.f32 %v788, %v807
  %v824 = vmul.f32 %v790, %v808
  %v825 = vmul.f32 %v792, %v809
  %v826 = vmul.f32 %v794, %v810
  %827 = vadd.xlane.f32.xlu0 %v731
  %v828 = vpop.xlane.xlu0 %827
  %829 = vadd.xlane.f32.xlu0 %v732
  %v830 = vpop.xlane.xlu0 %829
  %831 = vadd.xlane.f32.xlu0 %v733
  %v832 = vpop.xlane.xlu0 %831
  %833 = vadd.xlane.f32.xlu0 %v734
  %v834 = vpop.xlane.xlu0 %833
  %835 = vadd.xlane.f32.xlu0 %v735
  %v836 = vpop.xlane.xlu0 %835
  %837 = vadd.xlane.f32.xlu0 %v736
  %v838 = vpop.xlane.xlu0 %837
  %839 = vadd.xlane.f32.xlu0 %v737
  %v840 = vpop.xlane.xlu0 %839
  %841 = vadd.xlane.f32.xlu0 %v738
  %v842 = vpop.xlane.xlu0 %841
  %843 = vadd.xlane.f32.xlu0 %v739
  %v844 = vpop.xlane.xlu0 %843
  %845 = vadd.xlane.f32.xlu0 %v740
  %v846 = vpop.xlane.xlu0 %845
  %847 = vadd.xlane.f32.xlu0 %v741
  %v848 = vpop.xlane.xlu0 %847
  %849 = vadd.xlane.f32.xlu0 %v742
  %v850 = vpop.xlane.xlu0 %849
  %851 = vadd.xlane.f32.xlu0 %v743
  %v852 = vpop.xlane.xlu0 %851
  %853 = vadd.xlane.f32.xlu0 %v744
  %v854 = vpop.xlane.xlu0 %853
  %855 = vadd.xlane.f32.xlu0 %v745
  %v856 = vpop.xlane.xlu0 %855
  %857 = vadd.xlane.f32.xlu0 %v746
  %v858 = vpop.xlane.xlu0 %857
  %v859 = vadd.f32 %v811, %v828
  %v860 = vadd.f32 %v812, %v830
  %v861 = vadd.f32 %v813, %v832
  %v862 = vadd.f32 %v814, %v834
  %v863 = vadd.f32 %v815, %v836
  %v864 = vadd.f32 %v816, %v838
  %v865 = vadd.f32 %v817, %v840
  %v866 = vadd.f32 %v818, %v842
  %v867 = vadd.f32 %v819, %v844
  %v868 = vadd.f32 %v820, %v846
  %v869 = vadd.f32 %v821, %v848
  %v870 = vadd.f32 %v822, %v850
  %v871 = vadd.f32 %v823, %v852
  %v872 = vadd.f32 %v824, %v854
  %v873 = vadd.f32 %v825, %v856
  %v874 = vadd.f32 %v826, %v858
  %vm875 = vcmask 7168
  %876 = vst.msk [vmem:[#allocation3] sm:$0xff] %vm875, %v859
  %877 = vst.msk [vmem:[#allocation3 + $0x8] sm:$0xff] %vm875, %v860
  %878 = vst.msk [vmem:[#allocation3 + $0x10] sm:$0xff] %vm875, %v861
  %879 = vst.msk [vmem:[#allocation3 + $0x18] sm:$0xff] %vm875, %v862
  %880 = vst.msk [vmem:[#allocation3 + $0x20] sm:$0xff] %vm875, %v863
  %881 = vst.msk [vmem:[#allocation3 + $0x28] sm:$0xff] %vm875, %v864
  %882 = vst.msk [vmem:[#allocation3 + $0x30] sm:$0xff] %vm875, %v865
  %883 = vst.msk [vmem:[#allocation3 + $0x38] sm:$0xff] %vm875, %v866
  %884 = vst.msk [vmem:[#allocation3 + $0x40] sm:$0xff] %vm875, %v867
  %885 = vst.msk [vmem:[#allocation3 + $0x48] sm:$0xff] %vm875, %v868
  %886 = vst.msk [vmem:[#allocation3 + $0x50] sm:$0xff] %vm875, %v869
  %887 = vst.msk [vmem:[#allocation3 + $0x58] sm:$0xff] %vm875, %v870
  %888 = vst.msk [vmem:[#allocation3 + $0x60] sm:$0xff] %vm875, %v871
  %889 = vst.msk [vmem:[#allocation3 + $0x68] sm:$0xff] %vm875, %v872
  %890 = vst.msk [vmem:[#allocation3 + $0x70] sm:$0xff] %vm875, %v873
  %891 = vst.msk [vmem:[#allocation3 + $0x78] sm:$0xff] %vm875, %v874
  %892 = vst.msk [vmem:[#allocation2] sm:$0xff] %vm875, %v587
  %893 = vst.msk [vmem:[#allocation2 + $0x8] sm:$0xff] %vm875, %v588
  %894 = vst.msk [vmem:[#allocation2 + $0x10] sm:$0xff] %vm875, %v589
  %895 = vst.msk [vmem:[#allocation2 + $0x18] sm:$0xff] %vm875, %v590
  %896 = vst.msk [vmem:[#allocation2 + $0x20] sm:$0xff] %vm875, %v591
  %897 = vst.msk [vmem:[#allocation2 + $0x28] sm:$0xff] %vm875, %v592
  %898 = vst.msk [vmem:[#allocation2 + $0x30] sm:$0xff] %vm875, %v593
  %899 = vst.msk [vmem:[#allocation2 + $0x38] sm:$0xff] %vm875, %v594
  %900 = vst.msk [vmem:[#allocation2 + $0x40] sm:$0xff] %vm875, %v595
  %901 = vst.msk [vmem:[#allocation2 + $0x48] sm:$0xff] %vm875, %v596
  %902 = vst.msk [vmem:[#allocation2 + $0x50] sm:$0xff] %vm875, %v597
  %903 = vst.msk [vmem:[#allocation2 + $0x58] sm:$0xff] %vm875, %v598
  %904 = vst.msk [vmem:[#allocation2 + $0x60] sm:$0xff] %vm875, %v599
  %905 = vst.msk [vmem:[#allocation2 + $0x68] sm:$0xff] %vm875, %v600
  %906 = vst.msk [vmem:[#allocation2 + $0x70] sm:$0xff] %vm875, %v601
  %907 = vst.msk [vmem:[#allocation2 + $0x78] sm:$0xff] %vm875, %v602
  %v908 = vld [vmem:[#allocation4] sm:$0xff]
  %v909 = vld [vmem:[#allocation4 + $0x8] sm:$0xff]
  %v910 = vld [vmem:[#allocation4 + $0x10] sm:$0xff]
  %v911 = vld [vmem:[#allocation4 + $0x18] sm:$0xff]
  %v912 = vld [vmem:[#allocation4 + $0x20] sm:$0xff]
  %v913 = vld [vmem:[#allocation4 + $0x28] sm:$0xff]
  %v914 = vld [vmem:[#allocation4 + $0x30] sm:$0xff]
  %v915 = vld [vmem:[#allocation4 + $0x38] sm:$0xff]
  %v916 = vld [vmem:[#allocation4 + $0x40] sm:$0xff]
  %v917 = vld [vmem:[#allocation4 + $0x48] sm:$0xff]
  %v918 = vld [vmem:[#allocation4 + $0x50] sm:$0xff]
  %v919 = vld [vmem:[#allocation4 + $0x58] sm:$0xff]
  %v920 = vld [vmem:[#allocation4 + $0x60] sm:$0xff]
  %v921 = vld [vmem:[#allocation4 + $0x68] sm:$0xff]
  %v922 = vld [vmem:[#allocation4 + $0x70] sm:$0xff]
  %v923 = vld [vmem:[#allocation4 + $0x78] sm:$0xff]
  %v924 = vsel %vm507, %v310, 0.0
  %v925 = vsel %vm508, %v312, 0.0
  %v926 = vsel %vm509, %v315, 0.0
  %v927 = vsel %vm510, %v317, 0.0
  %v928 = vsel %vm511, %v320, 0.0
  %v929 = vsel %vm512, %v322, 0.0
  %v930 = vsel %vm513, %v325, 0.0
  %v931 = vsel %vm514, %v327, 0.0
  %v932 = vsel %vm515, %v330, 0.0
  %v933 = vsel %vm516, %v332, 0.0
  %v934 = vsel %vm517, %v335, 0.0
  %v935 = vsel %vm518, %v337, 0.0
  %v936 = vsel %vm519, %v340, 0.0
  %v937 = vsel %vm520, %v342, 0.0
  %v938 = vsel %vm521, %v345, 0.0
  %v939 = vsel %vm522, %v347, 0.0
  %940 = vadd.xlane.f32.xlu0 %v924
  %v941 = vpop.xlane.xlu0 %940
  %942 = vadd.xlane.f32.xlu0 %v925
  %v943 = vpop.xlane.xlu0 %942
  %944 = vadd.xlane.f32.xlu0 %v926
  %v945 = vpop.xlane.xlu0 %944
  %946 = vadd.xlane.f32.xlu0 %v927
  %v947 = vpop.xlane.xlu0 %946
  %948 = vadd.xlane.f32.xlu0 %v928
  %v949 = vpop.xlane.xlu0 %948
  %950 = vadd.xlane.f32.xlu0 %v929
  %v951 = vpop.xlane.xlu0 %950
  %952 = vadd.xlane.f32.xlu0 %v930
  %v953 = vpop.xlane.xlu0 %952
  %954 = vadd.xlane.f32.xlu0 %v931
  %v955 = vpop.xlane.xlu0 %954
  %956 = vadd.xlane.f32.xlu0 %v932
  %v957 = vpop.xlane.xlu0 %956
  %958 = vadd.xlane.f32.xlu0 %v933
  %v959 = vpop.xlane.xlu0 %958
  %960 = vadd.xlane.f32.xlu0 %v934
  %v961 = vpop.xlane.xlu0 %960
  %962 = vadd.xlane.f32.xlu0 %v935
  %v963 = vpop.xlane.xlu0 %962
  %964 = vadd.xlane.f32.xlu0 %v936
  %v965 = vpop.xlane.xlu0 %964
  %966 = vadd.xlane.f32.xlu0 %v937
  %v967 = vpop.xlane.xlu0 %966
  %968 = vadd.xlane.f32.xlu0 %v938
  %v969 = vpop.xlane.xlu0 %968
  %970 = vadd.xlane.f32.xlu0 %v939
  %v971 = vpop.xlane.xlu0 %970
  %v972 = vadd.f32 %v908, %v941
  %v973 = vadd.f32 %v909, %v943
  %v974 = vadd.f32 %v910, %v945
  %v975 = vadd.f32 %v911, %v947
  %v976 = vadd.f32 %v912, %v949
  %v977 = vadd.f32 %v913, %v951
  %v978 = vadd.f32 %v914, %v953
  %v979 = vadd.f32 %v915, %v955
  %v980 = vadd.f32 %v916, %v957
  %v981 = vadd.f32 %v917, %v959
  %v982 = vadd.f32 %v918, %v961
  %v983 = vadd.f32 %v919, %v963
  %v984 = vadd.f32 %v920, %v965
  %v985 = vadd.f32 %v921, %v967
  %v986 = vadd.f32 %v922, %v969
  %v987 = vadd.f32 %v923, %v971
  %988 = vst.msk [vmem:[#allocation4] sm:$0xff] %vm875, %v972
  %989 = vst.msk [vmem:[#allocation4 + $0x8] sm:$0xff] %vm875, %v973
  %990 = vst.msk [vmem:[#allocation4 + $0x10] sm:$0xff] %vm875, %v974
  %991 = vst.msk [vmem:[#allocation4 + $0x18] sm:$0xff] %vm875, %v975
  %992 = vst.msk [vmem:[#allocation4 + $0x20] sm:$0xff] %vm875, %v976
  %993 = vst.msk [vmem:[#allocation4 + $0x28] sm:$0xff] %vm875, %v977
  %994 = vst.msk [vmem:[#allocation4 + $0x30] sm:$0xff] %vm875, %v978
  %995 = vst.msk [vmem:[#allocation4 + $0x38] sm:$0xff] %vm875, %v979
  %996 = vst.msk [vmem:[#allocation4 + $0x40] sm:$0xff] %vm875, %v980
  %997 = vst.msk [vmem:[#allocation4 + $0x48] sm:$0xff] %vm875, %v981
  %998 = vst.msk [vmem:[#allocation4 + $0x50] sm:$0xff] %vm875, %v982
  %999 = vst.msk [vmem:[#allocation4 + $0x58] sm:$0xff] %vm875, %v983
  %1000 = vst.msk [vmem:[#allocation4 + $0x60] sm:$0xff] %vm875, %v984
  %1001 = vst.msk [vmem:[#allocation4 + $0x68] sm:$0xff] %vm875, %v985
  %1002 = vst.msk [vmem:[#allocation4 + $0x70] sm:$0xff] %vm875, %v986
  %1003 = vst.msk [vmem:[#allocation4 + $0x78] sm:$0xff] %vm875, %v987
  %v1004 = vld [vmem:[#allocation5] sm:$0xff]
  %v1005 = vld [vmem:[#allocation5 + $0x8] sm:$0xff]
  %v1006 = vld [vmem:[#allocation5 + $0x10] sm:$0xff]
  %v1007 = vld [vmem:[#allocation5 + $0x18] sm:$0xff]
  %v1008 = vld [vmem:[#allocation5 + $0x20] sm:$0xff]
  %v1009 = vld [vmem:[#allocation5 + $0x28] sm:$0xff]
  %v1010 = vld [vmem:[#allocation5 + $0x30] sm:$0xff]
  %v1011 = vld [vmem:[#allocation5 + $0x38] sm:$0xff]
  %v1012 = vld [vmem:[#allocation5 + $0x40] sm:$0xff]
  %v1013 = vld [vmem:[#allocation5 + $0x48] sm:$0xff]
  %v1014 = vld [vmem:[#allocation5 + $0x50] sm:$0xff]
  %v1015 = vld [vmem:[#allocation5 + $0x58] sm:$0xff]
  %v1016 = vld [vmem:[#allocation5 + $0x60] sm:$0xff]
  %v1017 = vld [vmem:[#allocation5 + $0x68] sm:$0xff]
  %v1018 = vld [vmem:[#allocation5 + $0x70] sm:$0xff]
  %v1019 = vld [vmem:[#allocation5 + $0x78] sm:$0xff]
  %v1020 = vsel %vm507, 1, 0
  %v1021 = vsel %vm508, 1, 0
  %v1022 = vsel %vm509, 1, 0
  %v1023 = vsel %vm510, 1, 0
  %v1024 = vsel %vm511, 1, 0
  %v1025 = vsel %vm512, 1, 0
  %v1026 = vsel %vm513, 1, 0
  %v1027 = vsel %vm514, 1, 0
  %v1028 = vsel %vm515, 1, 0
  %v1029 = vsel %vm516, 1, 0
  %v1030 = vsel %vm517, 1, 0
  %v1031 = vsel %vm518, 1, 0
  %v1032 = vsel %vm519, 1, 0
  %v1033 = vsel %vm520, 1, 0
  %v1034 = vsel %vm521, 1, 0
  %v1035 = vsel %vm522, 1, 0
  %v1036 = vcvt.s32.f32 %v1020
  %v1037 = vcvt.s32.f32 %v1021
  %v1038 = vcvt.s32.f32 %v1022
  %v1039 = vcvt.s32.f32 %v1023
  %v1040 = vcvt.s32.f32 %v1024
  %v1041 = vcvt.s32.f32 %v1025
  %v1042 = vcvt.s32.f32 %v1026
  %v1043 = vcvt.s32.f32 %v1027
  %v1044 = vcvt.s32.f32 %v1028
  %v1045 = vcvt.s32.f32 %v1029
  %v1046 = vcvt.s32.f32 %v1030
  %v1047 = vcvt.s32.f32 %v1031
  %v1048 = vcvt.s32.f32 %v1032
  %v1049 = vcvt.s32.f32 %v1033
  %v1050 = vcvt.s32.f32 %v1034
  %v1051 = vcvt.s32.f32 %v1035
  %1052 = vadd.xlane.f32.xlu0 %v1036
  %v1053 = vpop.xlane.xlu0 %1052
  %1054 = vadd.xlane.f32.xlu0 %v1037
  %v1055 = vpop.xlane.xlu0 %1054
  %1056 = vadd.xlane.f32.xlu0 %v1038
  %v1057 = vpop.xlane.xlu0 %1056
  %1058 = vadd.xlane.f32.xlu0 %v1039
  %v1059 = vpop.xlane.xlu0 %1058
  %1060 = vadd.xlane.f32.xlu0 %v1040
  %v1061 = vpop.xlane.xlu0 %1060
  %1062 = vadd.xlane.f32.xlu0 %v1041
  %v1063 = vpop.xlane.xlu0 %1062
  %1064 = vadd.xlane.f32.xlu0 %v1042
  %v1065 = vpop.xlane.xlu0 %1064
  %1066 = vadd.xlane.f32.xlu0 %v1043
  %v1067 = vpop.xlane.xlu0 %1066
  %1068 = vadd.xlane.f32.xlu0 %v1044
  %v1069 = vpop.xlane.xlu0 %1068
  %1070 = vadd.xlane.f32.xlu0 %v1045
  %v1071 = vpop.xlane.xlu0 %1070
  %1072 = vadd.xlane.f32.xlu0 %v1046
  %v1073 = vpop.xlane.xlu0 %1072
  %1074 = vadd.xlane.f32.xlu0 %v1047
  %v1075 = vpop.xlane.xlu0 %1074
  %1076 = vadd.xlane.f32.xlu0 %v1048
  %v1077 = vpop.xlane.xlu0 %1076
  %1078 = vadd.xlane.f32.xlu0 %v1049
  %v1079 = vpop.xlane.xlu0 %1078
  %1080 = vadd.xlane.f32.xlu0 %v1050
  %v1081 = vpop.xlane.xlu0 %1080
  %1082 = vadd.xlane.f32.xlu0 %v1051
  %v1083 = vpop.xlane.xlu0 %1082
  %v1084 = vadd.f32 %v1004, %v1053
  %v1085 = vadd.f32 %v1005, %v1055
  %v1086 = vadd.f32 %v1006, %v1057
  %v1087 = vadd.f32 %v1007, %v1059
  %v1088 = vadd.f32 %v1008, %v1061
  %v1089 = vadd.f32 %v1009, %v1063
  %v1090 = vadd.f32 %v1010, %v1065
  %v1091 = vadd.f32 %v1011, %v1067
  %v1092 = vadd.f32 %v1012, %v1069
  %v1093 = vadd.f32 %v1013, %v1071
  %v1094 = vadd.f32 %v1014, %v1073
  %v1095 = vadd.f32 %v1015, %v1075
  %v1096 = vadd.f32 %v1016, %v1077
  %v1097 = vadd.f32 %v1017, %v1079
  %v1098 = vadd.f32 %v1018, %v1081
  %v1099 = vadd.f32 %v1019, %v1083
  %1100 = vst.msk [vmem:[#allocation5] sm:$0xff] %vm875, %v1084
  %1101 = vst.msk [vmem:[#allocation5 + $0x8] sm:$0xff] %vm875, %v1085
  %1102 = vst.msk [vmem:[#allocation5 + $0x10] sm:$0xff] %vm875, %v1086
  %1103 = vst.msk [vmem:[#allocation5 + $0x18] sm:$0xff] %vm875, %v1087
  %1104 = vst.msk [vmem:[#allocation5 + $0x20] sm:$0xff] %vm875, %v1088
  %1105 = vst.msk [vmem:[#allocation5 + $0x28] sm:$0xff] %vm875, %v1089
  %1106 = vst.msk [vmem:[#allocation5 + $0x30] sm:$0xff] %vm875, %v1090
  %1107 = vst.msk [vmem:[#allocation5 + $0x38] sm:$0xff] %vm875, %v1091
  %1108 = vst.msk [vmem:[#allocation5 + $0x40] sm:$0xff] %vm875, %v1092
  %1109 = vst.msk [vmem:[#allocation5 + $0x48] sm:$0xff] %vm875, %v1093
  %1110 = vst.msk [vmem:[#allocation5 + $0x50] sm:$0xff] %vm875, %v1094
  %1111 = vst.msk [vmem:[#allocation5 + $0x58] sm:$0xff] %vm875, %v1095
  %1112 = vst.msk [vmem:[#allocation5 + $0x60] sm:$0xff] %vm875, %v1096
  %1113 = vst.msk [vmem:[#allocation5 + $0x68] sm:$0xff] %vm875, %v1097
  %1114 = vst.msk [vmem:[#allocation5 + $0x70] sm:$0xff] %vm875, %v1098
  %1115 = vst.msk [vmem:[#allocation5 + $0x78] sm:$0xff] %vm875, %v1099
  // Predicated region
  $region26: #{tpu_custom_call.1} parent=0 // pred_check
    %p1116 = pneg %p21
  $region27: #{tpu_custom_call.1} parent=0 // pred_check_branch
    %1118 = sbr.rel (%p1116) target = $region29
  $region28: #{tpu_custom_call.1} parent=0 // pred_region
    %vm1119 = vcmp.ne.s32.totalorder %v389, 2147483648
    %vm1120 = vcmp.ne.s32.totalorder %v390, 2147483648
    %vm1121 = vcmp.ne.s32.totalorder %v391, 2147483648
    %vm1122 = vcmp.ne.s32.totalorder %v392, 2147483648
    %vm1123 = vcmp.ne.s32.totalorder %v393, 2147483648
    %vm1124 = vcmp.ne.s32.totalorder %v394, 2147483648
    %vm1125 = vcmp.ne.s32.totalorder %v395, 2147483648
    %vm1126 = vcmp.ne.s32.totalorder %v396, 2147483648
    %vm1127 = vcmp.ne.s32.totalorder %v397, 2147483648
    %vm1128 = vcmp.ne.s32.totalorder %v398, 2147483648
    %vm1129 = vcmp.ne.s32.totalorder %v399, 2147483648
    %vm1130 = vcmp.ne.s32.totalorder %v400, 2147483648
    %vm1131 = vcmp.ne.s32.totalorder %v401, 2147483648
    %vm1132 = vcmp.ne.s32.totalorder %v402, 2147483648
    %vm1133 = vcmp.ne.s32.totalorder %v403, 2147483648
    %vm1134 = vcmp.ne.s32.totalorder %v404, 2147483648
    %v1135 = vld [vmem:[#allocation2] sm:$0xff]
    %v1136 = vld [vmem:[#allocation2 + $0x8] sm:$0xff]
    %v1137 = vld [vmem:[#allocation2 + $0x10] sm:$0xff]
    %v1138 = vld [vmem:[#allocation2 + $0x18] sm:$0xff]
    %v1139 = vld [vmem:[#allocation2 + $0x20] sm:$0xff]
    %v1140 = vld [vmem:[#allocation2 + $0x28] sm:$0xff]
    %v1141 = vld [vmem:[#allocation2 + $0x30] sm:$0xff]
    %v1142 = vld [vmem:[#allocation2 + $0x38] sm:$0xff]
    %v1143 = vld [vmem:[#allocation2 + $0x40] sm:$0xff]
    %v1144 = vld [vmem:[#allocation2 + $0x48] sm:$0xff]
    %v1145 = vld [vmem:[#allocation2 + $0x50] sm:$0xff]
    %v1146 = vld [vmem:[#allocation2 + $0x58] sm:$0xff]
    %v1147 = vld [vmem:[#allocation2 + $0x60] sm:$0xff]
    %v1148 = vld [vmem:[#allocation2 + $0x68] sm:$0xff]
    %v1149 = vld [vmem:[#allocation2 + $0x70] sm:$0xff]
    %v1150 = vld [vmem:[#allocation2 + $0x78] sm:$0xff]
    %v1151 = vld [vmem:[#allocation3] sm:$0xff]
    %v1152 = vld [vmem:[#allocation3 + $0x8] sm:$0xff]
    %v1153 = vld [vmem:[#allocation3 + $0x10] sm:$0xff]
    %v1154 = vld [vmem:[#allocation3 + $0x18] sm:$0xff]
    %v1155 = vld [vmem:[#allocation3 + $0x20] sm:$0xff]
    %v1156 = vld [vmem:[#allocation3 + $0x28] sm:$0xff]
    %v1157 = vld [vmem:[#allocation3 + $0x30] sm:$0xff]
    %v1158 = vld [vmem:[#allocation3 + $0x38] sm:$0xff]
    %v1159 = vld [vmem:[#allocation3 + $0x40] sm:$0xff]
    %v1160 = vld [vmem:[#allocation3 + $0x48] sm:$0xff]
    %v1161 = vld [vmem:[#allocation3 + $0x50] sm:$0xff]
    %v1162 = vld [vmem:[#allocation3 + $0x58] sm:$0xff]
    %v1163 = vld [vmem:[#allocation3 + $0x60] sm:$0xff]
    %v1164 = vld [vmem:[#allocation3 + $0x68] sm:$0xff]
    %v1165 = vld [vmem:[#allocation3 + $0x70] sm:$0xff]
    %v1166 = vld [vmem:[#allocation3 + $0x78] sm:$0xff]
    %v1167 = vlog2.pop %v1151
    %v1168 = vmul.f32 %v1167, 0.6931472
    %v1169 = vlog2.pop %v1152
    %v1170 = vmul.f32 %v1169, 0.6931472
    %v1171 = vlog2.pop %v1153
    %v1172 = vmul.f32 %v1171, 0.6931472
    %v1173 = vlog2.pop %v1154
    %v1174 = vmul.f32 %v1173, 0.6931472
    %v1175 = vlog2.pop %v1155
    %v1176 = vmul.f32 %v1175, 0.6931472
    %v1177 = vlog2.pop %v1156
    %v1178 = vmul.f32 %v1177, 0.6931472
    %v1179 = vlog2.pop %v1157
    %v1180 = vmul.f32 %v1179, 0.6931472
    %v1181 = vlog2.pop %v1158
    %v1182 = vmul.f32 %v1181, 0.6931472
    %v1183 = vlog2.pop %v1159
    %v1184 = vmul.f32 %v1183, 0.6931472
    %v1185 = vlog2.pop %v1160
    %v1186 = vmul.f32 %v1185, 0.6931472
    %v1187 = vlog2.pop %v1161
    %v1188 = vmul.f32 %v1187, 0.6931472
    %v1189 = vlog2.pop %v1162
    %v1190 = vmul.f32 %v1189, 0.6931472
    %v1191 = vlog2.pop %v1163
    %v1192 = vmul.f32 %v1191, 0.6931472
    %v1193 = vlog2.pop %v1164
    %v1194 = vmul.f32 %v1193, 0.6931472
    %v1195 = vlog2.pop %v1165
    %v1196 = vmul.f32 %v1195, 0.6931472
    %v1197 = vlog2.pop %v1166
    %v1198 = vmul.f32 %v1197, 0.6931472
    %v1199 = vadd.f32 %v1135, %v1168
    %v1200 = vadd.f32 %v1136, %v1170
    %v1201 = vadd.f32 %v1137, %v1172
    %v1202 = vadd.f32 %v1138, %v1174
    %v1203 = vadd.f32 %v1139, %v1176
    %v1204 = vadd.f32 %v1140, %v1178
    %v1205 = vadd.f32 %v1141, %v1180
    %v1206 = vadd.f32 %v1142, %v1182
    %v1207 = vadd.f32 %v1143, %v1184
    %v1208 = vadd.f32 %v1144, %v1186
    %v1209 = vadd.f32 %v1145, %v1188
    %v1210 = vadd.f32 %v1146, %v1190
    %v1211 = vadd.f32 %v1147, %v1192
    %v1212 = vadd.f32 %v1148, %v1194
    %v1213 = vadd.f32 %v1149, %v1196
    %v1214 = vadd.f32 %v1150, %v1198
    %v1215 = vld [vmem:[#allocation5] sm:$0xff]
    %v1216 = vld [vmem:[#allocation5 + $0x8] sm:$0xff]
    %v1217 = vld [vmem:[#allocation5 + $0x10] sm:$0xff]
    %v1218 = vld [vmem:[#allocation5 + $0x18] sm:$0xff]
    %v1219 = vld [vmem:[#allocation5 + $0x20] sm:$0xff]
    %v1220 = vld [vmem:[#allocation5 + $0x28] sm:$0xff]
    %v1221 = vld [vmem:[#allocation5 + $0x30] sm:$0xff]
    %v1222 = vld [vmem:[#allocation5 + $0x38] sm:$0xff]
    %v1223 = vld [vmem:[#allocation5 + $0x40] sm:$0xff]
    %v1224 = vld [vmem:[#allocation5 + $0x48] sm:$0xff]
    %v1225 = vld [vmem:[#allocation5 + $0x50] sm:$0xff]
    %v1226 = vld [vmem:[#allocation5 + $0x58] sm:$0xff]
    %v1227 = vld [vmem:[#allocation5 + $0x60] sm:$0xff]
    %v1228 = vld [vmem:[#allocation5 + $0x68] sm:$0xff]
    %v1229 = vld [vmem:[#allocation5 + $0x70] sm:$0xff]
    %v1230 = vld [vmem:[#allocation5 + $0x78] sm:$0xff]
    %v1231 = vld [vmem:[#allocation4] sm:$0xff]
    %v1232 = vld [vmem:[#allocation4 + $0x8] sm:$0xff]
    %v1233 = vld [vmem:[#allocation4 + $0x10] sm:$0xff]
    %v1234 = vld [vmem:[#allocation4 + $0x18] sm:$0xff]
    %v1235 = vld [vmem:[#allocation4 + $0x20] sm:$0xff]
    %v1236 = vld [vmem:[#allocation4 + $0x28] sm:$0xff]
    %v1237 = vld [vmem:[#allocation4 + $0x30] sm:$0xff]
    %v1238 = vld [vmem:[#allocation4 + $0x38] sm:$0xff]
    %v1239 = vld [vmem:[#allocation4 + $0x40] sm:$0xff]
    %v1240 = vld [vmem:[#allocation4 + $0x48] sm:$0xff]
    %v1241 = vld [vmem:[#allocation4 + $0x50] sm:$0xff]
    %v1242 = vld [vmem:[#allocation4 + $0x58] sm:$0xff]
    %v1243 = vld [vmem:[#allocation4 + $0x60] sm:$0xff]
    %v1244 = vld [vmem:[#allocation4 + $0x68] sm:$0xff]
    %v1245 = vld [vmem:[#allocation4 + $0x70] sm:$0xff]
    %v1246 = vld [vmem:[#allocation4 + $0x78] sm:$0xff]
    %v1247 = vmul.f32 %v1215, %v1199
    %v1248 = vmul.f32 %v1216, %v1200
    %v1249 = vmul.f32 %v1217, %v1201
    %v1250 = vmul.f32 %v1218, %v1202
    %v1251 = vmul.f32 %v1219, %v1203
    %v1252 = vmul.f32 %v1220, %v1204
    %v1253 = vmul.f32 %v1221, %v1205
    %v1254 = vmul.f32 %v1222, %v1206
    %v1255 = vmul.f32 %v1223, %v1207
    %v1256 = vmul.f32 %v1224, %v1208
    %v1257 = vmul.f32 %v1225, %v1209
    %v1258 = vmul.f32 %v1226, %v1210
    %v1259 = vmul.f32 %v1227, %v1211
    %v1260 = vmul.f32 %v1228, %v1212
    %v1261 = vmul.f32 %v1229, %v1213
    %v1262 = vmul.f32 %v1230, %v1214
    %v1263 = vsub.f32 %v1231, %v1247
    %v1264 = vsub.f32 %v1232, %v1248
    %v1265 = vsub.f32 %v1233, %v1249
    %v1266 = vsub.f32 %v1234, %v1250
    %v1267 = vsub.f32 %v1235, %v1251
    %v1268 = vsub.f32 %v1236, %v1252
    %v1269 = vsub.f32 %v1237, %v1253
    %v1270 = vsub.f32 %v1238, %v1254
    %v1271 = vsub.f32 %v1239, %v1255
    %v1272 = vsub.f32 %v1240, %v1256
    %v1273 = vsub.f32 %v1241, %v1257
    %v1274 = vsub.f32 %v1242, %v1258
    %v1275 = vsub.f32 %v1243, %v1259
    %v1276 = vsub.f32 %v1244, %v1260
    %v1277 = vsub.f32 %v1245, %v1261
    %v1278 = vsub.f32 %v1246, %v1262
    %v1279 = vrcp.pop %v1215
    %v1280 = vmul.f32 %v1215, %v1279
    %v1281 = vsub.f32 1.0, %v1280
    %v1282 = vmul.f32 %v1279, %v1281
    %v1283 = vadd.f32 %v1279, %v1282
    %vm1284 = vweird.f32 %v1215
    %vm1285 = vweird.f32 %v1279
    %vm1286 = vmor %vm1284, %vm1285
    %v1287 = vsel %vm1286, %v1279, %v1283
    %v1288 = vand.u32 2147483647, %v1215
    %vm1289 = vcmp.eq.f32.partialorder %v1288, 8.507059e+37
    %v1290 = vand.u32 %v1215, 2147483648
    %v1291 = vor.u32 1.1754944e-38, %v1290
    %v1292 = vsel %vm1289, %v1291, %v1287
    %v1293 = vmul.f32 %v1263, %v1292
    %v1294 = vrcp.pop %v1216
    %v1295 = vmul.f32 %v1216, %v1294
    %v1296 = vsub.f32 1.0, %v1295
    %v1297 = vmul.f32 %v1294, %v1296
    %v1298 = vadd.f32 %v1294, %v1297
    %vm1299 = vweird.f32 %v1216
    %vm1300 = vweird.f32 %v1294
    %vm1301 = vmor %vm1299, %vm1300
    %v1302 = vsel %vm1301, %v1294, %v1298
    %v1303 = vand.u32 2147483647, %v1216
    %vm1304 = vcmp.eq.f32.partialorder %v1303, 8.507059e+37
    %v1305 = vand.u32 %v1216, 2147483648
    %v1306 = vor.u32 1.1754944e-38, %v1305
    %v1307 = vsel %vm1304, %v1306, %v1302
    %v1308 = vmul.f32 %v1264, %v1307
    %v1309 = vrcp.pop %v1217
    %v1310 = vmul.f32 %v1217, %v1309
    %v1311 = vsub.f32 1.0, %v1310
    %v1312 = vmul.f32 %v1309, %v1311
    %v1313 = vadd.f32 %v1309, %v1312
    %vm1314 = vweird.f32 %v1217
    %vm1315 = vweird.f32 %v1309
    %vm1316 = vmor %vm1314, %vm1315
    %v1317 = vsel %vm1316, %v1309, %v1313
    %v1318 = vand.u32 2147483647, %v1217
    %vm1319 = vcmp.eq.f32.partialorder %v1318, 8.507059e+37
    %v1320 = vand.u32 %v1217, 2147483648
    %v1321 = vor.u32 1.1754944e-38, %v1320
    %v1322 = vsel %vm1319, %v1321, %v1317
    %v1323 = vmul.f32 %v1265, %v1322
    %v1324 = vrcp.pop %v1218
    %v1325 = vmul.f32 %v1218, %v1324
    %v1326 = vsub.f32 1.0, %v1325
    %v1327 = vmul.f32 %v1324, %v1326
    %v1328 = vadd.f32 %v1324, %v1327
    %vm1329 = vweird.f32 %v1218
    %vm1330 = vweird.f32 %v1324
    %vm1331 = vmor %vm1329, %vm1330
    %v1332 = vsel %vm1331, %v1324, %v1328
    %v1333 = vand.u32 2147483647, %v1218
    %vm1334 = vcmp.eq.f32.partialorder %v1333, 8.507059e+37
    %v1335 = vand.u32 %v1218, 2147483648
    %v1336 = vor.u32 1.1754944e-38, %v1335
    %v1337 = vsel %vm1334, %v1336, %v1332
    %v1338 = vmul.f32 %v1266, %v1337
    %v1339 = vrcp.pop %v1219
    %v1340 = vmul.f32 %v1219, %v1339
    %v1341 = vsub.f32 1.0, %v1340
    %v1342 = vmul.f32 %v1339, %v1341
    %v1343 = vadd.f32 %v1339, %v1342
    %vm1344 = vweird.f32 %v1219
    %vm1345 = vweird.f32 %v1339
    %vm1346 = vmor %vm1344, %vm1345
    %v1347 = vsel %vm1346, %v1339, %v1343
    %v1348 = vand.u32 2147483647, %v1219
    %vm1349 = vcmp.eq.f32.partialorder %v1348, 8.507059e+37
    %v1350 = vand.u32 %v1219, 2147483648
    %v1351 = vor.u32 1.1754944e-38, %v1350
    %v1352 = vsel %vm1349, %v1351, %v1347
    %v1353 = vmul.f32 %v1267, %v1352
    %v1354 = vrcp.pop %v1220
    %v1355 = vmul.f32 %v1220, %v1354
    %v1356 = vsub.f32 1.0, %v1355
    %v1357 = vmul.f32 %v1354, %v1356
    %v1358 = vadd.f32 %v1354, %v1357
    %vm1359 = vweird.f32 %v1220
    %vm1360 = vweird.f32 %v1354
    %vm1361 = vmor %vm1359, %vm1360
    %v1362 = vsel %vm1361, %v1354, %v1358
    %v1363 = vand.u32 2147483647, %v1220
    %vm1364 = vcmp.eq.f32.partialorder %v1363, 8.507059e+37
    %v1365 = vand.u32 %v1220, 2147483648
    %v1366 = vor.u32 1.1754944e-38, %v1365
    %v1367 = vsel %vm1364, %v1366, %v1362
    %v1368 = vmul.f32 %v1268, %v1367
    %v1369 = vrcp.pop %v1221
    %v1370 = vmul.f32 %v1221, %v1369
    %v1371 = vsub.f32 1.0, %v1370
    %v1372 = vmul.f32 %v1369, %v1371
    %v1373 = vadd.f32 %v1369, %v1372
    %vm1374 = vweird.f32 %v1221
    %vm1375 = vweird.f32 %v1369
    %vm1376 = vmor %vm1374, %vm1375
    %v1377 = vsel %vm1376, %v1369, %v1373
    %v1378 = vand.u32 2147483647, %v1221
    %vm1379 = vcmp.eq.f32.partialorder %v1378, 8.507059e+37
    %v1380 = vand.u32 %v1221, 2147483648
    %v1381 = vor.u32 1.1754944e-38, %v1380
    %v1382 = vsel %vm1379, %v1381, %v1377
    %v1383 = vmul.f32 %v1269, %v1382
    %v1384 = vrcp.pop %v1222
    %v1385 = vmul.f32 %v1222, %v1384
    %v1386 = vsub.f32 1.0, %v1385
    %v1387 = vmul.f32 %v1384, %v1386
    %v1388 = vadd.f32 %v1384, %v1387
    %vm1389 = vweird.f32 %v1222
    %vm1390 = vweird.f32 %v1384
    %vm1391 = vmor %vm1389, %vm1390
    %v1392 = vsel %vm1391, %v1384, %v1388
    %v1393 = vand.u32 2147483647, %v1222
    %vm1394 = vcmp.eq.f32.partialorder %v1393, 8.507059e+37
    %v1395 = vand.u32 %v1222, 2147483648
    %v1396 = vor.u32 1.1754944e-38, %v1395
    %v1397 = vsel %vm1394, %v1396, %v1392
    %v1398 = vmul.f32 %v1270, %v1397
    %v1399 = vrcp.pop %v1223
    %v1400 = vmul.f32 %v1223, %v1399
    %v1401 = vsub.f32 1.0, %v1400
    %v1402 = vmul.f32 %v1399, %v1401
    %v1403 = vadd.f32 %v1399, %v1402
    %vm1404 = vweird.f32 %v1223
    %vm1405 = vweird.f32 %v1399
    %vm1406 = vmor %vm1404, %vm1405
    %v1407 = vsel %vm1406, %v1399, %v1403
    %v1408 = vand.u32 2147483647, %v1223
    %vm1409 = vcmp.eq.f32.partialorder %v1408, 8.507059e+37
    %v1410 = vand.u32 %v1223, 2147483648
    %v1411 = vor.u32 1.1754944e-38, %v1410
    %v1412 = vsel %vm1409, %v1411, %v1407
    %v1413 = vmul.f32 %v1271, %v1412
    %v1414 = vrcp.pop %v1224
    %v1415 = vmul.f32 %v1224, %v1414
    %v1416 = vsub.f32 1.0, %v1415
    %v1417 = vmul.f32 %v1414, %v1416
    %v1418 = vadd.f32 %v1414, %v1417
    %vm1419 = vweird.f32 %v1224
    %vm1420 = vweird.f32 %v1414
    %vm1421 = vmor %vm1419, %vm1420
    %v1422 = vsel %vm1421, %v1414, %v1418
    %v1423 = vand.u32 2147483647, %v1224
    %vm1424 = vcmp.eq.f32.partialorder %v1423, 8.507059e+37
    %v1425 = vand.u32 %v1224, 2147483648
    %v1426 = vor.u32 1.1754944e-38, %v1425
    %v1427 = vsel %vm1424, %v1426, %v1422
    %v1428 = vmul.f32 %v1272, %v1427
    %v1429 = vrcp.pop %v1225
    %v1430 = vmul.f32 %v1225, %v1429
    %v1431 = vsub.f32 1.0, %v1430
    %v1432 = vmul.f32 %v1429, %v1431
    %v1433 = vadd.f32 %v1429, %v1432
    %vm1434 = vweird.f32 %v1225
    %vm1435 = vweird.f32 %v1429
    %vm1436 = vmor %vm1434, %vm1435
    %v1437 = vsel %vm1436, %v1429, %v1433
    %v1438 = vand.u32 2147483647, %v1225
    %vm1439 = vcmp.eq.f32.partialorder %v1438, 8.507059e+37
    %v1440 = vand.u32 %v1225, 2147483648
    %v1441 = vor.u32 1.1754944e-38, %v1440
    %v1442 = vsel %vm1439, %v1441, %v1437
    %v1443 = vmul.f32 %v1273, %v1442
    %v1444 = vrcp.pop %v1226
    %v1445 = vmul.f32 %v1226, %v1444
    %v1446 = vsub.f32 1.0, %v1445
    %v1447 = vmul.f32 %v1444, %v1446
    %v1448 = vadd.f32 %v1444, %v1447
    %vm1449 = vweird.f32 %v1226
    %vm1450 = vweird.f32 %v1444
    %vm1451 = vmor %vm1449, %vm1450
    %v1452 = vsel %vm1451, %v1444, %v1448
    %v1453 = vand.u32 2147483647, %v1226
    %vm1454 = vcmp.eq.f32.partialorder %v1453, 8.507059e+37
    %v1455 = vand.u32 %v1226, 2147483648
    %v1456 = vor.u32 1.1754944e-38, %v1455
    %v1457 = vsel %vm1454, %v1456, %v1452
    %v1458 = vmul.f32 %v1274, %v1457
    %v1459 = vrcp.pop %v1227
    %v1460 = vmul.f32 %v1227, %v1459
    %v1461 = vsub.f32 1.0, %v1460
    %v1462 = vmul.f32 %v1459, %v1461
    %v1463 = vadd.f32 %v1459, %v1462
    %vm1464 = vweird.f32 %v1227
    %vm1465 = vweird.f32 %v1459
    %vm1466 = vmor %vm1464, %vm1465
    %v1467 = vsel %vm1466, %v1459, %v1463
    %v1468 = vand.u32 2147483647, %v1227
    %vm1469 = vcmp.eq.f32.partialorder %v1468, 8.507059e+37
    %v1470 = vand.u32 %v1227, 2147483648
    %v1471 = vor.u32 1.1754944e-38, %v1470
    %v1472 = vsel %vm1469, %v1471, %v1467
    %v1473 = vmul.f32 %v1275, %v1472
    %v1474 = vrcp.pop %v1228
    %v1475 = vmul.f32 %v1228, %v1474
    %v1476 = vsub.f32 1.0, %v1475
    %v1477 = vmul.f32 %v1474, %v1476
    %v1478 = vadd.f32 %v1474, %v1477
    %vm1479 = vweird.f32 %v1228
    %vm1480 = vweird.f32 %v1474
    %vm1481 = vmor %vm1479, %vm1480
    %v1482 = vsel %vm1481, %v1474, %v1478
    %v1483 = vand.u32 2147483647, %v1228
    %vm1484 = vcmp.eq.f32.partialorder %v1483, 8.507059e+37
    %v1485 = vand.u32 %v1228, 2147483648
    %v1486 = vor.u32 1.1754944e-38, %v1485
    %v1487 = vsel %vm1484, %v1486, %v1482
    %v1488 = vmul.f32 %v1276, %v1487
    %v1489 = vrcp.pop %v1229
    %v1490 = vmul.f32 %v1229, %v1489
    %v1491 = vsub.f32 1.0, %v1490
    %v1492 = vmul.f32 %v1489, %v1491
    %v1493 = vadd.f32 %v1489, %v1492
    %vm1494 = vweird.f32 %v1229
    %vm1495 = vweird.f32 %v1489
    %vm1496 = vmor %vm1494, %vm1495
    %v1497 = vsel %vm1496, %v1489, %v1493
    %v1498 = vand.u32 2147483647, %v1229
    %vm1499 = vcmp.eq.f32.partialorder %v1498, 8.507059e+37
    %v1500 = vand.u32 %v1229, 2147483648
    %v1501 = vor.u32 1.1754944e-38, %v1500
    %v1502 = vsel %vm1499, %v1501, %v1497
    %v1503 = vmul.f32 %v1277, %v1502
    %v1504 = vrcp.pop %v1230
    %v1505 = vmul.f32 %v1230, %v1504
    %v1506 = vsub.f32 1.0, %v1505
    %v1507 = vmul.f32 %v1504, %v1506
    %v1508 = vadd.f32 %v1504, %v1507
    %vm1509 = vweird.f32 %v1230
    %vm1510 = vweird.f32 %v1504
    %vm1511 = vmor %vm1509, %vm1510
    %v1512 = vsel %vm1511, %v1504, %v1508
    %v1513 = vand.u32 2147483647, %v1230
    %vm1514 = vcmp.eq.f32.partialorder %v1513, 8.507059e+37
    %v1515 = vand.u32 %v1230, 2147483648
    %v1516 = vor.u32 1.1754944e-38, %v1515
    %v1517 = vsel %vm1514, %v1516, %v1512
    %v1518 = vmul.f32 %v1278, %v1517
    %v1519 = vsel %vm1119, %v1293, 0.0
    %v1520 = vsel %vm1120, %v1308, 0.0
    %v1521 = vsel %vm1121, %v1323, 0.0
    %v1522 = vsel %vm1122, %v1338, 0.0
    %v1523 = vsel %vm1123, %v1353, 0.0
    %v1524 = vsel %vm1124, %v1368, 0.0
    %v1525 = vsel %vm1125, %v1383, 0.0
    %v1526 = vsel %vm1126, %v1398, 0.0
    %v1527 = vsel %vm1127, %v1413, 0.0
    %v1528 = vsel %vm1128, %v1428, 0.0
    %v1529 = vsel %vm1129, %v1443, 0.0
    %v1530 = vsel %vm1130, %v1458, 0.0
    %v1531 = vsel %vm1131, %v1473, 0.0
    %v1532 = vsel %vm1132, %v1488, 0.0
    %v1533 = vsel %vm1133, %v1503, 0.0
    %v1534 = vsel %vm1134, %v1518, 0.0
    %1535 = vst.msk [vmem:[%s5] sm:$0xff] %vm875, %v1519
    %1536 = vst.msk [vmem:[%s5 + $0x8] sm:$0xff] %vm875, %v1520
    %1537 = vst.msk [vmem:[%s5 + $0x10] sm:$0xff] %vm875, %v1521
    %1538 = vst.msk [vmem:[%s5 + $0x18] sm:$0xff] %vm875, %v1522
    %1539 = vst.msk [vmem:[%s5 + $0x20] sm:$0xff] %vm875, %v1523
    %1540 = vst.msk [vmem:[%s5 + $0x28] sm:$0xff] %vm875, %v1524
    %1541 = vst.msk [vmem:[%s5 + $0x30] sm:$0xff] %vm875, %v1525
    %1542 = vst.msk [vmem:[%s5 + $0x38] sm:$0xff] %vm875, %v1526
    %1543 = vst.msk [vmem:[%s5 + $0x40] sm:$0xff] %vm875, %v1527
    %1544 = vst.msk [vmem:[%s5 + $0x48] sm:$0xff] %vm875, %v1528
    %1545 = vst.msk [vmem:[%s5 + $0x50] sm:$0xff] %vm875, %v1529
    %1546 = vst.msk [vmem:[%s5 + $0x58] sm:$0xff] %vm875, %v1530
    %1547 = vst.msk [vmem:[%s5 + $0x60] sm:$0xff] %vm875, %v1531
    %1548 = vst.msk [vmem:[%s5 + $0x68] sm:$0xff] %vm875, %v1532
    %1549 = vst.msk [vmem:[%s5 + $0x70] sm:$0xff] %vm875, %v1533
    %1550 = vst.msk [vmem:[%s5 + $0x78] sm:$0xff] %vm875, %v1534
  $region29: #{tpu_custom_call.1} parent=0 // pred_fallthru
    _
  // Predicated region
  $region30: #{tpu_custom_call.1} parent=0 // pred_check
    _
  $region31: #{tpu_custom_call.1} parent=0 // pred_check_branch
    %1552 = sbr.rel (0) target = $region33
  $region32: #{tpu_custom_call.1} parent=0 // pred_region
    _
  $region33: #{tpu_custom_call.1} parent=0 // pred_fallthru
    _
  // Predicated region
  $region34: #{tpu_custom_call.1} parent=0 // pred_check
    _
  $region35: #{tpu_custom_call.1} parent=0 // pred_check_branch
    %1554 = sbr.rel (0) target = $region37
  $region36: #{tpu_custom_call.1} parent=0 // pred_region
    _
  $region37: #{tpu_custom_call.1} parent=0 // pred_fallthru
    _

</llo_original>
